<compile_context>
chip_gen: v6e
topology: v6e:2x2x1
jax: 0.10.0
libtpu: 0.0.40
codegen_flags: <defaults>
</compile_context>

<pallas_src>
import functools

import jax
import jax.numpy as jnp
import numpy as np
from jax.experimental import pallas as pl
from jax.experimental.pallas import tpu as pltpu

H = W = 3
S = H * W            # 9 spatial positions
LANES = 128          # lane-dense padded width
EPS = 1e-5           # torch BatchNorm2d default eps

# weight-slab block indices (each block is 128 rows of the (768, 128) slab)
_W0, _W1, _W2, _WHEAD, _WFC, _POOL = range(6)


# ---------------------------------------------------------------------------
# Pallas kernel
# ---------------------------------------------------------------------------
def network_kernel(x_ref, w_ref, b_ref, out_ref):
    dot = lambda a, m: jnp.dot(a, m, preferred_element_type=jnp.float32)
    relu = lambda a: jnp.maximum(a, 0.0)

    def blk(k):  # static 128-row slices of the weight slab
        return w_ref[k * LANES:(k + 1) * LANES, :]

    biases = b_ref[...]                      # (8, 128)
    pool = blk(_POOL)                        # per-channel (groups of 9) averaging

    def bn(h):
        # per-row (= per-sample, N=1) batch-norm, gamma=1 beta=0.
        # mean and E[x^2] are independent matmuls -> no dependent MXU bubble.
        mean = dot(h, pool)
        ex2 = dot(h * h, pool)
        var = jnp.maximum(ex2 - mean * mean, 0.0)
        return (h - mean) * jax.lax.rsqrt(var + EPS)

    x = x_ref[...]                                               # (BB, 128)

    # trunk: conv -> bn -> relu, conv1 -> bn -> relu, conv2 -> bn -> +res -> relu
    h = relu(bn(dot(x, blk(_W0)) + biases[0:1, :]))              # lanes 0..35
    res = h
    h = relu(bn(dot(h, blk(_W1)) + biases[1:2, :]))
    h = bn(dot(h, blk(_W2)) + biases[2:3, :])
    h = relu(h + res)
    # TODO(synk): torch forward calls print(x) here (debug side-effect); omitted.

    # fused policy_head + value_head 1x1 convs, shared bn/relu
    # lanes 0..17 = policy (2ch x 9), lanes 18..26 = value (1ch x 9)
    head = relu(bn(dot(h, blk(_WHEAD)) + biases[3:4, :]))

    # fused block-diag policy_fc (both channels) + value_fc; lane 27 is a
    # constant 1 (bias row) used to fold the value_scalar bias in below.
    fc = dot(head, blk(_WFC)) + biases[4:5, :]

    lane = jax.lax.broadcasted_iota(jnp.int32, fc.shape, 1)
    neg = jnp.float32(-1e30)

    def softmax_group(lo, hi):
        g = (lane >= lo) & (lane < hi)
        m = jnp.max(jnp.where(g, fc, neg), axis=-1, keepdims=True)
        e = jnp.exp(jnp.where(g, fc - m, neg))
        s = jnp.sum(e, axis=-1, keepdims=True)
        return e * pl.reciprocal(s, approx=True)

    p_row = softmax_group(0, S) + softmax_group(S, 2 * S)        # lanes 0..17

    # value head: value_scalar(relu(value_fc(.))) + bias, all via one masked
    # row-reduce (value_scalar weights live in bias-slab row 5, lanes 18..26;
    # lane 27 carries the value_scalar bias, multiplied by the constant 1).
    wvs = biases[5:6, :]
    v = jnp.sum(relu(fc) * wvs, axis=-1, keepdims=True)          # (BB, 1)
    v = jnp.tanh(v)

    # single lane-dense store: lanes 0..17 policy probs, lane 18 value
    out_ref[...] = jnp.where(lane == 2 * S, v, p_row)


# ---------------------------------------------------------------------------
# One-time host-side parameter packing
# ---------------------------------------------------------------------------
def _conv3x3_to_dense(w):
    """(Cout, Cin, 3, 3), padding=1 on a 3x3 grid -> (Cin*9, Cout*9) acting on
    row-vector activations (channel-major, spatial row-major)."""
    w = np.asarray(w, np.float32)
    cout, cin = w.shape[:2]
    m = np.zeros((cin * S, cout * S), dtype=np.float32)
    for oy in range(H):
        for ox in range(W):
            for dy in range(3):
                for dx in range(3):
                    iy, ix = oy + dy - 1, ox + dx - 1
                    if 0 <= iy < H and 0 <= ix < W:
                        for co in range(cout):
                            for ci in range(cin):
                                m[ci * S + iy * W + ix,
                                  co * S + oy * W + ox] += w[co, ci, dy, dx]
    return m


def _conv1x1_to_dense(w):
    w = np.asarray(w, np.float32)
    cout, cin = w.shape[:2]
    m = np.zeros((cin * S, cout * S), dtype=np.float32)
    for co in range(cout):
        for ci in range(cin):
            for p in range(S):
                m[ci * S + p, co * S + p] = w[co, ci, 0, 0]
    return m


def _pad_block(m):
    out = np.zeros((LANES, LANES), np.float32)
    out[:m.shape[0], :m.shape[1]] = m
    return out


def prepare_params(params):
    """One-time packing of all weights into two lane-dense slabs."""
    p = {k: np.asarray(v, np.float32) for k, v in params.items()}

    w0 = _pad_block(_conv3x3_to_dense(p["conv_w"]))
    w1 = _pad_block(_conv3x3_to_dense(p["conv1_w"]))
    w2 = _pad_block(_conv3x3_to_dense(p["conv2_w"]))

    whead = np.zeros((LANES, LANES), np.float32)                 # fused 1x1 heads
    whead[:4 * S, 0:2 * S] = _conv1x1_to_dense(p["policy_head_w"])
    whead[:4 * S, 2 * S:3 * S] = _conv1x1_to_dense(p["value_head_w"])

    wfc = np.zeros((LANES, LANES), np.float32)                   # fused FCs
    wfc[0:S, 0:S] = p["policy_fc_w"].T
    wfc[S:2 * S, S:2 * S] = p["policy_fc_w"].T
    wfc[2 * S:3 * S, 2 * S:3 * S] = p["value_fc_w"].T

    pool = np.zeros((LANES, LANES), np.float32)                  # per-channel avg
    for c in range(4):
        pool[c * S:(c + 1) * S, c * S:(c + 1) * S] = 1.0 / S

    wslab = np.concatenate([w0, w1, w2, whead, wfc, pool], axis=0)  # (768, 128)

    bslab = np.zeros((8, LANES), np.float32)
    bslab[0, :4 * S] = np.repeat(p["conv_b"], S)
    bslab[1, :4 * S] = np.repeat(p["conv1_b"], S)
    bslab[2, :4 * S] = np.repeat(p["conv2_b"], S)
    bslab[3, 0:2 * S] = np.repeat(p["policy_head_b"], S)
    bslab[3, 2 * S:3 * S] = np.repeat(p["value_head_b"], S)
    bslab[4, 0:S] = p["policy_fc_b"]
    bslab[4, S:2 * S] = p["policy_fc_b"]
    bslab[4, 2 * S:3 * S] = p["value_fc_b"]
    bslab[4, 3 * S] = 1.0                                        # const 1 -> bias carrier
    bslab[5, 2 * S:3 * S] = p["value_scalar_w"].reshape(-1)
    bslab[5, 3 * S] = p["value_scalar_b"].reshape(())            # value_scalar bias

    return jnp.asarray(wslab), jnp.asarray(bslab)


# ---------------------------------------------------------------------------
# Jitted wrapper
# ---------------------------------------------------------------------------
@jax.jit
def neural_network_forward(state, wslab, bslab):
    """state: (B, 3, 3, 3) — B independent single-sample (N=1) forwards.
    Returns (policy (B, 2, 9), value (B, 1))."""
    B = state.shape[0]
    Bp = ((B + 7) // 8) * 8
    block_b = max(bb for bb in (8, 16, 32, 64, 128, 256) if Bp % bb == 0)

    x = jnp.reshape(state, (B, 3 * S)).astype(jnp.float32)
    x = jnp.pad(x, ((0, Bp - B), (0, LANES - 3 * S)))            # (Bp, 128)

    out = pl.pallas_call(
        network_kernel,
        out_shape=jax.ShapeDtypeStruct((Bp, LANES), jnp.float32),
        grid=(Bp // block_b,),
        in_specs=[
            pl.BlockSpec((block_b, LANES), lambda i: (i, 0)),
            pl.BlockSpec((6 * LANES, LANES), lambda i: (0, 0)),
            pl.BlockSpec((8, LANES), lambda i: (0, 0)),
        ],
        out_specs=pl.BlockSpec((block_b, LANES), lambda i: (i, 0)),
        compiler_params=pltpu.CompilerParams(
            dimension_semantics=("parallel",)),
    )(x, wslab, bslab)

    policy = out[:B, :2 * S].reshape(B, 2, S)
    value = out[:B, 2 * S:2 * S + 1]
    return policy, value


# ---------------------------------------------------------------------------
# Deterministic init matching the module's __init__
# ---------------------------------------------------------------------------
def init_params(key):
    ks = jax.random.split(key, 8)

    def conv_w(k, cout, cin, ksz):
        n = ksz * ksz * cout
        return (jax.random.normal(k, (cout, cin, ksz, ksz), jnp.float32)
                * np.sqrt(2.0 / n))

    def lin_w(k, out_f, in_f):
        return jax.random.normal(k, (out_f, in_f), jnp.float32) * 0.01

    z = lambda *s: jnp.zeros(s, jnp.float32)
    return dict(
        conv_w=conv_w(ks[0], 4, 3, 3), conv_b=z(4),
        conv1_w=conv_w(ks[1], 4, 4, 3), conv1_b=z(4),
        conv2_w=conv_w(ks[2], 4, 4, 3), conv2_b=z(4),
        policy_head_w=conv_w(ks[3], 2, 4, 1), policy_head_b=z(2),
        value_head_w=conv_w(ks[4], 1, 4, 1), value_head_b=z(1),
        policy_fc_w=lin_w(ks[5], 9, 9), policy_fc_b=z(9),
        value_fc_w=lin_w(ks[6], 9, 9), value_fc_b=z(9),
        value_scalar_w=lin_w(ks[7], 1, 9), value_scalar_b=z(1),
    )


# ---------------------------------------------------------------------------
# Pure-JAX reference (mirrors the torch forward, one sample at a time)
# ---------------------------------------------------------------------------
def reference_forward(state, params):
    def conv(x, w, b, pad):
        y = jax.lax.conv_general_dilated(
            x, w, (1, 1), [(pad, pad), (pad, pad)],
            dimension_numbers=("NCHW", "OIHW", "NCHW"))
        return y + b[None, :, None, None]

    def bn(x):
        m = jnp.mean(x, axis=(0, 2, 3), keepdims=True)
        v = jnp.mean((x - m) ** 2, axis=(0, 2, 3), keepdims=True)
        return (x - m) / jnp.sqrt(v + EPS)

    relu = lambda a: jnp.maximum(a, 0.0)
    p = params

    x = relu(bn(conv(state, p["conv_w"], p["conv_b"], 1)))
    res = x
    x = relu(bn(conv(x, p["conv1_w"], p["conv1_b"], 1)))
    x = bn(conv(x, p["conv2_w"], p["conv2_b"], 1))
    x = relu(x + res)

    pol = relu(bn(conv(x, p["policy_head_w"], p["policy_head_b"], 0)))
    pol = pol.reshape(pol.shape[1], -1)                         # (2, 9)
    pol = pol @ p["policy_fc_w"].T + p["policy_fc_b"]
    pol = jax.nn.softmax(pol, axis=1)

    v = relu(bn(conv(x, p["value_head_w"], p["value_head_b"], 0)))
    v = v.reshape(v.shape[0], -1)                               # (1, 9)
    v = relu(v @ p["value_fc_w"].T + p["value_fc_b"])
    v = jnp.tanh(v @ p["value_scalar_w"].T + p["value_scalar_b"])
    return pol, v


if __name__ == "__main__":
    key = jax.random.PRNGKey(0)
    x_key, p_key = jax.random.split(key)

    B = 8
    states = jax.random.normal(x_key, (B, 3, 3, 3), jnp.float32)  # B independent NCHW boards
    params = init_params(p_key)

    wslab, bslab = prepare_params(params)                        # one-time packing
    p_out, v_out = neural_network_forward(states, wslab, bslab)
    jax.block_until_ready((p_out, v_out))

    p_refs, v_refs = [], []
    for i in range(B):
        pr, vr = reference_forward(states[i:i + 1], params)
        p_refs.append(pr)
        v_refs.append(vr)
    p_ref = jnp.stack(p_refs)                                    # (B, 2, 9)
    v_ref = jnp.concatenate(v_refs, axis=0)                      # (B, 1)

    ok = (np.allclose(np.asarray(p_out), np.asarray(p_ref), atol=2e-2, rtol=2e-2)
          and np.allclose(np.asarray(v_out), np.asarray(v_ref), atol=2e-2, rtol=2e-2))
    if ok:
        print("KERNEL_OK")
    else:
        print("MISMATCH",
              float(np.max(np.abs(np.asarray(p_out) - np.asarray(p_ref)))),
              float(np.max(np.abs(np.asarray(v_out) - np.asarray(v_ref)))))
</pallas_src>

<mosaic_0001>
module attributes {stable_mosaic.version = 11 : i64} {
  func.func @network_kernel(%arg0: i32, %arg1: memref<8x128xf32, #tpu.memory_space<vmem>>, %arg2: memref<768x128xf32, #tpu.memory_space<vmem>>, %arg3: memref<8x128xf32, #tpu.memory_space<vmem>>, %arg4: memref<8x128xf32, #tpu.memory_space<vmem>>) attributes {dimension_semantics = [#tpu.dimension_semantics<parallel>], iteration_bounds = array<i64: 1>, scalar_prefetch = 0 : i64, scratch_operands = 0 : i64, tpu.core_type = #tpu.core_type<tc>, window_params = [{transform_indices = @transform_0, window_bounds = array<i64: 8, 128>}, {pipeline_mode = #tpu.pipeline_mode<synchronous>, transform_indices = @transform_1, window_bounds = array<i64: 768, 128>}, {pipeline_mode = #tpu.pipeline_mode<synchronous>, transform_indices = @transform_2, window_bounds = array<i64: 8, 128>}, {transform_indices = @transform_3, window_bounds = array<i64: 8, 128>}]} {
    %c0 = arith.constant 0 : index
    %c0_0 = arith.constant 0 : index
    %0 = vector.load %arg3[%c0, %c0_0] : memref<8x128xf32, #tpu.memory_space<vmem>>, vector<8x128xf32>
    %c640 = arith.constant 640 : index
    %c0_1 = arith.constant 0 : index
    %1 = vector.load %arg2[%c640, %c0_1] : memref<768x128xf32, #tpu.memory_space<vmem>>, vector<128x128xf32>
    %c0_2 = arith.constant 0 : index
    %c0_3 = arith.constant 0 : index
    %2 = vector.load %arg1[%c0_2, %c0_3] : memref<8x128xf32, #tpu.memory_space<vmem>>, vector<8x128xf32>
    %c0_4 = arith.constant 0 : index
    %c0_5 = arith.constant 0 : index
    %3 = vector.load %arg2[%c0_4, %c0_5] : memref<768x128xf32, #tpu.memory_space<vmem>>, vector<128x128xf32>
    %cst = arith.constant dense<0.000000e+00> : vector<8x128xf32>
    %4 = tpu.matmul %2, %3, %cst {dimension_numbers = #tpu.dot_dimension_numbers<[1], [0], [0], [1], [0, 0, 1, 1], [], []>} : vector<8x128xf32>, vector<128x128xf32>, vector<8x128xf32> -> vector<8x128xf32>
    %5 = vector.extract_strided_slice %0 {offsets = [0, 0], sizes = [1, 128], strides = [1, 1]} : vector<8x128xf32> to vector<1x128xf32>
    %6 = vector.broadcast %5 : vector<1x128xf32> to vector<8x128xf32>
    %7 = arith.addf %4, %6 : vector<8x128xf32>
    %cst_6 = arith.constant dense<0.000000e+00> : vector<8x128xf32>
    %8 = tpu.matmul %7, %1, %cst_6 {dimension_numbers = #tpu.dot_dimension_numbers<[1], [0], [0], [1], [0, 0, 1, 1], [], []>} : vector<8x128xf32>, vector<128x128xf32>, vector<8x128xf32> -> vector<8x128xf32>
    %9 = arith.mulf %7, %7 : vector<8x128xf32>
    %cst_7 = arith.constant dense<0.000000e+00> : vector<8x128xf32>
    %10 = tpu.matmul %9, %1, %cst_7 {dimension_numbers = #tpu.dot_dimension_numbers<[1], [0], [0], [1], [0, 0, 1, 1], [], []>} : vector<8x128xf32>, vector<128x128xf32>, vector<8x128xf32> -> vector<8x128xf32>
    %11 = arith.mulf %8, %8 : vector<8x128xf32>
    %12 = arith.subf %10, %11 : vector<8x128xf32>
    %cst_8 = arith.constant 0.000000e+00 : f32
    %13 = vector.broadcast %cst_8 : f32 to vector<8x128xf32>
    %14 = arith.maximumf %12, %13 : vector<8x128xf32>
    %15 = arith.subf %7, %8 : vector<8x128xf32>
    %cst_9 = arith.constant 9.99999974E-6 : f32
    %16 = vector.broadcast %cst_9 : f32 to vector<8x128xf32>
    %17 = arith.addf %14, %16 : vector<8x128xf32>
    %18 = math.rsqrt %17 : vector<8x128xf32>
    %19 = arith.mulf %15, %18 : vector<8x128xf32>
    %cst_10 = arith.constant 0.000000e+00 : f32
    %20 = vector.broadcast %cst_10 : f32 to vector<8x128xf32>
    %21 = arith.maximumf %19, %20 : vector<8x128xf32>
    %c128 = arith.constant 128 : index
    %c0_11 = arith.constant 0 : index
    %22 = vector.load %arg2[%c128, %c0_11] : memref<768x128xf32, #tpu.memory_space<vmem>>, vector<128x128xf32>
    %cst_12 = arith.constant dense<0.000000e+00> : vector<8x128xf32>
    %23 = tpu.matmul %21, %22, %cst_12 {dimension_numbers = #tpu.dot_dimension_numbers<[1], [0], [0], [1], [0, 0, 1, 1], [], []>} : vector<8x128xf32>, vector<128x128xf32>, vector<8x128xf32> -> vector<8x128xf32>
    %24 = vector.extract_strided_slice %0 {offsets = [1, 0], sizes = [1, 128], strides = [1, 1]} : vector<8x128xf32> to vector<1x128xf32>
    %25 = vector.broadcast %24 : vector<1x128xf32> to vector<8x128xf32>
    %26 = arith.addf %23, %25 : vector<8x128xf32>
    %cst_13 = arith.constant dense<0.000000e+00> : vector<8x128xf32>
    %27 = tpu.matmul %26, %1, %cst_13 {dimension_numbers = #tpu.dot_dimension_numbers<[1], [0], [0], [1], [0, 0, 1, 1], [], []>} : vector<8x128xf32>, vector<128x128xf32>, vector<8x128xf32> -> vector<8x128xf32>
    %28 = arith.mulf %26, %26 : vector<8x128xf32>
    %cst_14 = arith.constant dense<0.000000e+00> : vector<8x128xf32>
    %29 = tpu.matmul %28, %1, %cst_14 {dimension_numbers = #tpu.dot_dimension_numbers<[1], [0], [0], [1], [0, 0, 1, 1], [], []>} : vector<8x128xf32>, vector<128x128xf32>, vector<8x128xf32> -> vector<8x128xf32>
    %30 = arith.mulf %27, %27 : vector<8x128xf32>
    %31 = arith.subf %29, %30 : vector<8x128xf32>
    %cst_15 = arith.constant 0.000000e+00 : f32
    %32 = vector.broadcast %cst_15 : f32 to vector<8x128xf32>
    %33 = arith.maximumf %31, %32 : vector<8x128xf32>
    %34 = arith.subf %26, %27 : vector<8x128xf32>
    %cst_16 = arith.constant 9.99999974E-6 : f32
    %35 = vector.broadcast %cst_16 : f32 to vector<8x128xf32>
    %36 = arith.addf %33, %35 : vector<8x128xf32>
    %37 = math.rsqrt %36 : vector<8x128xf32>
    %38 = arith.mulf %34, %37 : vector<8x128xf32>
    %cst_17 = arith.constant 0.000000e+00 : f32
    %39 = vector.broadcast %cst_17 : f32 to vector<8x128xf32>
    %40 = arith.maximumf %38, %39 : vector<8x128xf32>
    %c256 = arith.constant 256 : index
    %c0_18 = arith.constant 0 : index
    %41 = vector.load %arg2[%c256, %c0_18] : memref<768x128xf32, #tpu.memory_space<vmem>>, vector<128x128xf32>
    %cst_19 = arith.constant dense<0.000000e+00> : vector<8x128xf32>
    %42 = tpu.matmul %40, %41, %cst_19 {dimension_numbers = #tpu.dot_dimension_numbers<[1], [0], [0], [1], [0, 0, 1, 1], [], []>} : vector<8x128xf32>, vector<128x128xf32>, vector<8x128xf32> -> vector<8x128xf32>
    %43 = vector.extract_strided_slice %0 {offsets = [2, 0], sizes = [1, 128], strides = [1, 1]} : vector<8x128xf32> to vector<1x128xf32>
    %44 = vector.broadcast %43 : vector<1x128xf32> to vector<8x128xf32>
    %45 = arith.addf %42, %44 : vector<8x128xf32>
    %cst_20 = arith.constant dense<0.000000e+00> : vector<8x128xf32>
    %46 = tpu.matmul %45, %1, %cst_20 {dimension_numbers = #tpu.dot_dimension_numbers<[1], [0], [0], [1], [0, 0, 1, 1], [], []>} : vector<8x128xf32>, vector<128x128xf32>, vector<8x128xf32> -> vector<8x128xf32>
    %47 = arith.mulf %45, %45 : vector<8x128xf32>
    %cst_21 = arith.constant dense<0.000000e+00> : vector<8x128xf32>
    %48 = tpu.matmul %47, %1, %cst_21 {dimension_numbers = #tpu.dot_dimension_numbers<[1], [0], [0], [1], [0, 0, 1, 1], [], []>} : vector<8x128xf32>, vector<128x128xf32>, vector<8x128xf32> -> vector<8x128xf32>
    %49 = arith.mulf %46, %46 : vector<8x128xf32>
    %50 = arith.subf %48, %49 : vector<8x128xf32>
    %cst_22 = arith.constant 0.000000e+00 : f32
    %51 = vector.broadcast %cst_22 : f32 to vector<8x128xf32>
    %52 = arith.maximumf %50, %51 : vector<8x128xf32>
    %53 = arith.subf %45, %46 : vector<8x128xf32>
    %cst_23 = arith.constant 9.99999974E-6 : f32
    %54 = vector.broadcast %cst_23 : f32 to vector<8x128xf32>
    %55 = arith.addf %52, %54 : vector<8x128xf32>
    %56 = math.rsqrt %55 : vector<8x128xf32>
    %57 = arith.mulf %53, %56 : vector<8x128xf32>
    %58 = arith.addf %57, %21 : vector<8x128xf32>
    %cst_24 = arith.constant 0.000000e+00 : f32
    %59 = vector.broadcast %cst_24 : f32 to vector<8x128xf32>
    %60 = arith.maximumf %58, %59 : vector<8x128xf32>
    %c384 = arith.constant 384 : index
    %c0_25 = arith.constant 0 : index
    %61 = vector.load %arg2[%c384, %c0_25] : memref<768x128xf32, #tpu.memory_space<vmem>>, vector<128x128xf32>
    %cst_26 = arith.constant dense<0.000000e+00> : vector<8x128xf32>
    %62 = tpu.matmul %60, %61, %cst_26 {dimension_numbers = #tpu.dot_dimension_numbers<[1], [0], [0], [1], [0, 0, 1, 1], [], []>} : vector<8x128xf32>, vector<128x128xf32>, vector<8x128xf32> -> vector<8x128xf32>
    %63 = vector.extract_strided_slice %0 {offsets = [3, 0], sizes = [1, 128], strides = [1, 1]} : vector<8x128xf32> to vector<1x128xf32>
    %64 = vector.broadcast %63 : vector<1x128xf32> to vector<8x128xf32>
    %65 = arith.addf %62, %64 : vector<8x128xf32>
    %cst_27 = arith.constant dense<0.000000e+00> : vector<8x128xf32>
    %66 = tpu.matmul %65, %1, %cst_27 {dimension_numbers = #tpu.dot_dimension_numbers<[1], [0], [0], [1], [0, 0, 1, 1], [], []>} : vector<8x128xf32>, vector<128x128xf32>, vector<8x128xf32> -> vector<8x128xf32>
    %67 = arith.mulf %65, %65 : vector<8x128xf32>
    %cst_28 = arith.constant dense<0.000000e+00> : vector<8x128xf32>
    %68 = tpu.matmul %67, %1, %cst_28 {dimension_numbers = #tpu.dot_dimension_numbers<[1], [0], [0], [1], [0, 0, 1, 1], [], []>} : vector<8x128xf32>, vector<128x128xf32>, vector<8x128xf32> -> vector<8x128xf32>
    %69 = arith.mulf %66, %66 : vector<8x128xf32>
    %70 = arith.subf %68, %69 : vector<8x128xf32>
    %cst_29 = arith.constant 0.000000e+00 : f32
    %71 = vector.broadcast %cst_29 : f32 to vector<8x128xf32>
    %72 = arith.maximumf %70, %71 : vector<8x128xf32>
    %73 = arith.subf %65, %66 : vector<8x128xf32>
    %cst_30 = arith.constant 9.99999974E-6 : f32
    %74 = vector.broadcast %cst_30 : f32 to vector<8x128xf32>
    %75 = arith.addf %72, %74 : vector<8x128xf32>
    %76 = math.rsqrt %75 : vector<8x128xf32>
    %77 = arith.mulf %73, %76 : vector<8x128xf32>
    %cst_31 = arith.constant 0.000000e+00 : f32
    %78 = vector.broadcast %cst_31 : f32 to vector<8x128xf32>
    %79 = arith.maximumf %77, %78 : vector<8x128xf32>
    %c512 = arith.constant 512 : index
    %c0_32 = arith.constant 0 : index
    %80 = vector.load %arg2[%c512, %c0_32] : memref<768x128xf32, #tpu.memory_space<vmem>>, vector<128x128xf32>
    %cst_33 = arith.constant dense<0.000000e+00> : vector<8x128xf32>
    %81 = tpu.matmul %79, %80, %cst_33 {dimension_numbers = #tpu.dot_dimension_numbers<[1], [0], [0], [1], [0, 0, 1, 1], [], []>} : vector<8x128xf32>, vector<128x128xf32>, vector<8x128xf32> -> vector<8x128xf32>
    %82 = vector.extract_strided_slice %0 {offsets = [4, 0], sizes = [1, 128], strides = [1, 1]} : vector<8x128xf32> to vector<1x128xf32>
    %83 = vector.broadcast %82 : vector<1x128xf32> to vector<8x128xf32>
    %84 = arith.addf %81, %83 : vector<8x128xf32>
    %85 = tpu.iota {dimensions = array<i32: 1>} : vector<8x128xi32>
    %c0_i32 = arith.constant 0 : i32
    %86 = vector.broadcast %c0_i32 : i32 to vector<8x128xi32>
    %87 = arith.cmpi sge, %85, %86 : vector<8x128xi32>
    %c9_i32 = arith.constant 9 : i32
    %88 = vector.broadcast %c9_i32 : i32 to vector<8x128xi32>
    %89 = arith.cmpi slt, %85, %88 : vector<8x128xi32>
    %90 = arith.andi %87, %89 : vector<8x128xi1>
    %cst_34 = arith.constant -1.000000e+30 : f32
    %91 = vector.broadcast %cst_34 : f32 to vector<8x128xf32>
    %92 = arith.select %90, %84, %91 : vector<8x128xi1>, vector<8x128xf32>
    %cst_35 = arith.constant dense<0xFF800000> : vector<8xf32>
    %93 = vector.multi_reduction <maximumf>, %92, %cst_35 [1] : vector<8x128xf32> to vector<8xf32>
    %94 = vector.shape_cast %93 : vector<8xf32> to vector<8x1xf32>
    %95 = vector.broadcast %94 : vector<8x1xf32> to vector<8x128xf32>
    %96 = arith.subf %84, %95 : vector<8x128xf32>
    %cst_36 = arith.constant -1.000000e+30 : f32
    %97 = vector.broadcast %cst_36 : f32 to vector<8x128xf32>
    %98 = arith.select %90, %96, %97 : vector<8x128xi1>, vector<8x128xf32>
    %99 = math.exp %98 : vector<8x128xf32>
    %cst_37 = arith.constant dense<0.000000e+00> : vector<8xf32>
    %100 = vector.multi_reduction <add>, %99, %cst_37 [1] : vector<8x128xf32> to vector<8xf32>
    %101 = vector.shape_cast %100 : vector<8xf32> to vector<8x1xf32>
    %102 = tpu.reciprocal %101 {approx = true} : vector<8x1xf32> -> vector<8x1xf32>
    %103 = vector.broadcast %102 : vector<8x1xf32> to vector<8x128xf32>
    %104 = arith.mulf %99, %103 : vector<8x128xf32>
    %c9_i32_38 = arith.constant 9 : i32
    %105 = vector.broadcast %c9_i32_38 : i32 to vector<8x128xi32>
    %106 = arith.cmpi sge, %85, %105 : vector<8x128xi32>
    %c18_i32 = arith.constant 18 : i32
    %107 = vector.broadcast %c18_i32 : i32 to vector<8x128xi32>
    %108 = arith.cmpi slt, %85, %107 : vector<8x128xi32>
    %109 = arith.andi %106, %108 : vector<8x128xi1>
    %cst_39 = arith.constant -1.000000e+30 : f32
    %110 = vector.broadcast %cst_39 : f32 to vector<8x128xf32>
    %111 = arith.select %109, %84, %110 : vector<8x128xi1>, vector<8x128xf32>
    %cst_40 = arith.constant dense<0xFF800000> : vector<8xf32>
    %112 = vector.multi_reduction <maximumf>, %111, %cst_40 [1] : vector<8x128xf32> to vector<8xf32>
    %113 = vector.shape_cast %112 : vector<8xf32> to vector<8x1xf32>
    %114 = vector.broadcast %113 : vector<8x1xf32> to vector<8x128xf32>
    %115 = arith.subf %84, %114 : vector<8x128xf32>
    %cst_41 = arith.constant -1.000000e+30 : f32
    %116 = vector.broadcast %cst_41 : f32 to vector<8x128xf32>
    %117 = arith.select %109, %115, %116 : vector<8x128xi1>, vector<8x128xf32>
    %118 = math.exp %117 : vector<8x128xf32>
    %cst_42 = arith.constant dense<0.000000e+00> : vector<8xf32>
    %119 = vector.multi_reduction <add>, %118, %cst_42 [1] : vector<8x128xf32> to vector<8xf32>
    %120 = vector.shape_cast %119 : vector<8xf32> to vector<8x1xf32>
    %121 = tpu.reciprocal %120 {approx = true} : vector<8x1xf32> -> vector<8x1xf32>
    %122 = vector.broadcast %121 : vector<8x1xf32> to vector<8x128xf32>
    %123 = arith.mulf %118, %122 : vector<8x128xf32>
    %124 = arith.addf %104, %123 : vector<8x128xf32>
    %125 = vector.extract_strided_slice %0 {offsets = [5, 0], sizes = [1, 128], strides = [1, 1]} : vector<8x128xf32> to vector<1x128xf32>
    %cst_43 = arith.constant 0.000000e+00 : f32
    %126 = vector.broadcast %cst_43 : f32 to vector<8x128xf32>
    %127 = arith.maximumf %84, %126 : vector<8x128xf32>
    %128 = vector.broadcast %125 : vector<1x128xf32> to vector<8x128xf32>
    %129 = arith.mulf %127, %128 : vector<8x128xf32>
    %cst_44 = arith.constant dense<0.000000e+00> : vector<8xf32>
    %130 = vector.multi_reduction <add>, %129, %cst_44 [1] : vector<8x128xf32> to vector<8xf32>
    %131 = vector.shape_cast %130 : vector<8xf32> to vector<8x1xf32>
    %132 = math.tanh %131 : vector<8x1xf32>
    %c18_i32_45 = arith.constant 18 : i32
    %133 = vector.broadcast %c18_i32_45 : i32 to vector<8x128xi32>
    %134 = arith.cmpi eq, %85, %133 : vector<8x128xi32>
    %135 = vector.shape_cast %132 : vector<8x1xf32> to vector<8x1xf32>
    %136 = vector.broadcast %135 : vector<8x1xf32> to vector<8x128xf32>
    %137 = arith.select %134, %136, %124 : vector<8x128xi1>, vector<8x128xf32>
    %c0_46 = arith.constant 0 : index
    %c0_47 = arith.constant 0 : index
    %138 = vector.load %arg4[%c0_46, %c0_47] : memref<8x128xf32, #tpu.memory_space<vmem>>, vector<8x128xf32>
    tpu.vector_store %arg4[%c0_46, %c0_47], %137 {strides = array<i32>} : memref<8x128xf32, #tpu.memory_space<vmem>>, vector<8x128xf32>,
    return
  }
  func.func @transform_0(%arg0: i32) -> (i32, i32) {
    %c0_i32 = arith.constant 0 : i32
    %c0_i32_0 = arith.constant 0 : i32
    return %arg0, %c0_i32 : i32, i32
  }
  func.func @transform_1(%arg0: i32) -> (i32, i32) {
    %c0_i32 = arith.constant 0 : i32
    %c0_i32_0 = arith.constant 0 : i32
    %c0_i32_1 = arith.constant 0 : i32
    return %c0_i32, %c0_i32_0 : i32, i32
  }
  func.func @transform_2(%arg0: i32) -> (i32, i32) {
    %c0_i32 = arith.constant 0 : i32
    %c0_i32_0 = arith.constant 0 : i32
    %c0_i32_1 = arith.constant 0 : i32
    return %c0_i32, %c0_i32_0 : i32, i32
  }
  func.func @transform_3(%arg0: i32) -> (i32, i32) {
    %c0_i32 = arith.constant 0 : i32
    %c0_i32_0 = arith.constant 0 : i32
    return %arg0, %c0_i32 : i32, i32
  }
}

</mosaic_0001>

<llo_original>
// kernel: neural_network_forward.1
$region0: #{neural_network_forward.1}
  #allocation0 [shape = 'u32[]', space=smem, size = 0x4, offset = 0x4, fixed_abs, tag = 'smem constant byte address 0x4 - core index']
  #allocation1 [shape = 'u32[144,128]{1,0:T(1,128)}', space=vmem, size = 0x12000, scoped, tag = 'internal scratch']
  %s0 = inlined_call_operand.vmem [shape: f32[8,128], index: 0, kind: input, shape index: {}]
  %s1 = inlined_call_operand.hbm [shape: f32[768,128], index: 1, kind: input, shape index: {}]
  %s2 = inlined_call_operand.vmem [shape: f32[8,128], index: 2, kind: input, shape index: {}]
  %s3 = inlined_call_operand.vmem [shape: f32[8,128], index: 3, kind: output, shape index: {}]
  %s4 = sld [smem:[#allocation0]]
  $region26: #{neural_network_forward.1} parent=0
    _
  %s6 = ssub.s32 1, %s4
  %s7 = scalar_select 0, %s6, %s4
  $region1: #{neural_network_forward.1} parent=0
    #allocation2 [shape = 'u8[393216]{0}', space=vmem, size = 0x60000, scoped, tag = 'input window, operand 1, single buffered']
    #allocation3 [shape = 's32[1]{0}', space=sflag, size = 0x4, scoped, tag = 'scoped memory for neural_network_forward.1']
    %8 = vsyncpa [#allocation3], 0
    // Predicated region
    $region2: #{neural_network_forward.1} parent=1 // pred_check
      _
    $region3: #{neural_network_forward.1} parent=1 // pred_check_branch
      %10 = sbr.rel (0) target = $region5
    $region4: #{neural_network_forward.1} parent=1 // pred_region
      _
    $region5: #{neural_network_forward.1} parent=1 // pred_fallthru
      _
    // Predicated region
    $region6: #{neural_network_forward.1} parent=1 // pred_check
      _
    $region7: #{neural_network_forward.1} parent=1 // pred_check_branch
      %12 = sbr.rel (0) target = $region9
    $region8: #{neural_network_forward.1} parent=1 // pred_region
      %s14 = ssub.s32 12288, 12288
      %15 = vsyncadd [#allocation3], %s14
      %s16 = sshll.u32 [#allocation2], 4
      %s17 = int_to_ptr.vmem [resolvable:$true] %s16
      %22 = dma.hbm_to_vmem [thread:$0]  %s1, 12288, %s17, [#allocation3], 128, 128, 8
    $region9: #{neural_network_forward.1} parent=1 // pred_fallthru
      _
    // Predicated region
    $region10: #{neural_network_forward.1} parent=1 // pred_check
      _
    $region11: #{neural_network_forward.1} parent=1 // pred_check_branch
      %24 = sbr.rel (0) target = $region13
    $region12: #{neural_network_forward.1} parent=1 // pred_region
      _
    $region13: #{neural_network_forward.1} parent=1 // pred_fallthru
      _
    // Predicated region
    $region14: #{neural_network_forward.1} parent=1 // pred_check
      _
    $region15: #{neural_network_forward.1} parent=1 // pred_check_branch
      %26 = sbr.rel (0) target = $region17
    $region16: #{neural_network_forward.1} parent=1 // pred_region
      %27 = dma.done [#allocation3], 12288
    $region17: #{neural_network_forward.1} parent=1 // pred_fallthru
      _
    %v28 = vld [vmem:[%s2] sm:$0xff]
    %v29 = vld [vmem:[#allocation2 + $0x280] sm:$0xff]
    %v30 = vld [vmem:[#allocation2 + $0x288] sm:$0xff]
    %v31 = vld [vmem:[#allocation2 + $0x290] sm:$0xff]
    %v32 = vld [vmem:[#allocation2 + $0x298] sm:$0xff]
    %v33 = vld [vmem:[#allocation2 + $0x2a0] sm:$0xff]
    %v34 = vld [vmem:[#allocation2 + $0x2a8] sm:$0xff]
    %v35 = vld [vmem:[#allocation2 + $0x2b0] sm:$0xff]
    %v36 = vld [vmem:[#allocation2 + $0x2b8] sm:$0xff]
    %v37 = vld [vmem:[#allocation2 + $0x2c0] sm:$0xff]
    %v38 = vld [vmem:[#allocation2 + $0x2c8] sm:$0xff]
    %v39 = vld [vmem:[#allocation2 + $0x2d0] sm:$0xff]
    %v40 = vld [vmem:[#allocation2 + $0x2d8] sm:$0xff]
    %v41 = vld [vmem:[#allocation2 + $0x2e0] sm:$0xff]
    %v42 = vld [vmem:[#allocation2 + $0x2e8] sm:$0xff]
    %v43 = vld [vmem:[#allocation2 + $0x2f0] sm:$0xff]
    %v44 = vld [vmem:[#allocation2 + $0x2f8] sm:$0xff]
    %v45 = vld [vmem:[%s0] sm:$0xff]
    %v46 = vld [vmem:[#allocation2] sm:$0xff]
    %v47 = vld [vmem:[#allocation2 + $0x8] sm:$0xff]
    %v48 = vld [vmem:[#allocation2 + $0x10] sm:$0xff]
    %v49 = vld [vmem:[#allocation2 + $0x18] sm:$0xff]
    %v50 = vld [vmem:[#allocation2 + $0x20] sm:$0xff]
    %v51 = vld [vmem:[#allocation2 + $0x28] sm:$0xff]
    %v52 = vld [vmem:[#allocation2 + $0x30] sm:$0xff]
    %v53 = vld [vmem:[#allocation2 + $0x38] sm:$0xff]
    %v54 = vld [vmem:[#allocation2 + $0x40] sm:$0xff]
    %v55 = vld [vmem:[#allocation2 + $0x48] sm:$0xff]
    %v56 = vld [vmem:[#allocation2 + $0x50] sm:$0xff]
    %v57 = vld [vmem:[#allocation2 + $0x58] sm:$0xff]
    %v58 = vld [vmem:[#allocation2 + $0x60] sm:$0xff]
    %v59 = vld [vmem:[#allocation2 + $0x68] sm:$0xff]
    %v60 = vld [vmem:[#allocation2 + $0x70] sm:$0xff]
    %v61 = vld [vmem:[#allocation2 + $0x78] sm:$0xff]
    %v62 = vlaneseq
    %v63 = vshrl.u32 %v62, 7
    %v64 = vsub.s32 0, %v63
    %v65 = vrot.slane %v28, %v64
    %66 = vmatprep.subr.mxu0 0.0
    %67 = vmatpush1.msra.mxu0 %v61
    %68 = vmatprep.subr.mxu0 0.0
    %69 = vmatpush1.msra.mxu0 %v60
    %70 = vmatprep.subr.mxu0 0.0
    %71 = vmatpush1.msra.mxu0 %v59
    %72 = vmatprep.subr.mxu0 0.0
    %73 = vmatpush1.msra.mxu0 %v58
    %74 = vmatprep.subr.mxu0 0.0
    %75 = vmatpush1.msra.mxu0 %v57
    %76 = vmatprep.subr.mxu0 0.0
    %77 = vmatpush1.msra.mxu0 %v56
    %78 = vmatprep.subr.mxu0 0.0
    %79 = vmatpush1.msra.mxu0 %v55
    %80 = vmatprep.subr.mxu0 0.0
    %81 = vmatpush1.msra.mxu0 %v54
    %82 = vmatprep.subr.mxu0 0.0
    %83 = vmatpush1.msra.mxu0 %v53
    %84 = vmatprep.subr.mxu0 0.0
    %85 = vmatpush1.msra.mxu0 %v52
    %86 = vmatprep.subr.mxu0 0.0
    %87 = vmatpush1.msra.mxu0 %v51
    %88 = vmatprep.subr.mxu0 0.0
    %89 = vmatpush1.msra.mxu0 %v50
    %90 = vmatprep.subr.mxu0 0.0
    %91 = vmatpush1.msra.mxu0 %v49
    %92 = vmatprep.subr.mxu0 0.0
    %93 = vmatpush1.msra.mxu0 %v48
    %94 = vmatprep.subr.mxu0 0.0
    %95 = vmatpush1.msra.mxu0 %v47
    %96 = vmatprep.subr.mxu0 0.0
    %97 = vmatpush1.msra.mxu0 %v46
    %98 = vmatprep.subr.mxu0 0.0
    %99 = vmatpush2.msra.mxu0 0.0
    %100 = vmatprep.subr.mxu0 0.0
    %101 = vmatpush2.msra.mxu0 0.0
    %102 = vmatprep.subr.mxu0 0.0
    %103 = vmatpush2.msra.mxu0 0.0
    %104 = vmatprep.subr.mxu0 0.0
    %105 = vmatpush2.msra.mxu0 0.0
    %106 = vmatprep.subr.mxu0 0.0
    %107 = vmatpush2.msra.mxu0 0.0
    %108 = vmatprep.subr.mxu0 0.0
    %109 = vmatpush2.msra.mxu0 0.0
    %110 = vmatprep.subr.mxu0 0.0
    %111 = vmatpush2.msra.mxu0 0.0
    %112 = vmatprep.subr.mxu0 0.0
    %113 = vmatpush2.msra.mxu0 0.0
    %114 = vmatprep.subr.mxu0 0.0
    %115 = vmatpush2.msra.mxu0 0.0
    %116 = vmatprep.subr.mxu0 0.0
    %117 = vmatpush2.msra.mxu0 0.0
    %118 = vmatprep.subr.mxu0 0.0
    %119 = vmatpush2.msra.mxu0 0.0
    %120 = vmatprep.subr.mxu0 0.0
    %121 = vmatpush2.msra.mxu0 0.0
    %122 = vmatprep.subr.mxu0 0.0
    %123 = vmatpush2.msra.mxu0 0.0
    %124 = vmatprep.subr.mxu0 0.0
    %125 = vmatpush2.msra.mxu0 0.0
    %126 = vmatprep.subr.mxu0 0.0
    %127 = vmatpush2.msra.mxu0 0.0
    %128 = vmatprep.subr.mxu0 0.0
    %129 = vmatpush2.msra.mxu0 0.0
    %130 = vmatprep.mubr.f32.mxu0 0.0
    %131 = vmatmul.mubr.f32.gmra.mxu0 %v45
    %v132 = vpop.f32.mrf.mxu0
    %v133 = vadd.f32 %v65, %v132
    %v134 = vpop.f32.mrf.mxu0
    %135 = vdwg.mxu0
    %136 = vmatprep.subr.mxu0 0.0
    %137 = vmatpush1.msra.mxu0 %v44
    %138 = vmatprep.subr.mxu0 0.0
    %139 = vmatpush1.msra.mxu0 %v43
    %140 = vmatprep.subr.mxu0 0.0
    %141 = vmatpush1.msra.mxu0 %v42
    %142 = vmatprep.subr.mxu0 0.0
    %143 = vmatpush1.msra.mxu0 %v41
    %144 = vmatprep.subr.mxu0 0.0
    %145 = vmatpush1.msra.mxu0 %v40
    %146 = vmatprep.subr.mxu0 0.0
    %147 = vmatpush1.msra.mxu0 %v39
    %148 = vmatprep.subr.mxu0 0.0
    %149 = vmatpush1.msra.mxu0 %v38
    %150 = vmatprep.subr.mxu0 0.0
    %151 = vmatpush1.msra.mxu0 %v37
    %152 = vmatprep.subr.mxu0 0.0
    %153 = vmatpush1.msra.mxu0 %v36
    %154 = vmatprep.subr.mxu0 0.0
    %155 = vmatpush1.msra.mxu0 %v35
    %156 = vmatprep.subr.mxu0 0.0
    %157 = vmatpush1.msra.mxu0 %v34
    %158 = vmatprep.subr.mxu0 0.0
    %159 = vmatpush1.msra.mxu0 %v33
    %160 = vmatprep.subr.mxu0 0.0
    %161 = vmatpush1.msra.mxu0 %v32
    %162 = vmatprep.subr.mxu0 0.0
    %163 = vmatpush1.msra.mxu0 %v31
    %164 = vmatprep.subr.mxu0 0.0
    %165 = vmatpush1.msra.mxu0 %v30
    %166 = vmatprep.subr.mxu0 0.0
    %167 = vmatpush1.msra.mxu0 %v29
    %168 = vmatprep.subr.mxu0 0.0
    %169 = vmatpush2.msra.mxu0 0.0
    %170 = vmatprep.subr.mxu0 0.0
    %171 = vmatpush2.msra.mxu0 0.0
    %172 = vmatprep.subr.mxu0 0.0
    %173 = vmatpush2.msra.mxu0 0.0
    %174 = vmatprep.subr.mxu0 0.0
    %175 = vmatpush2.msra.mxu0 0.0
    %176 = vmatprep.subr.mxu0 0.0
    %177 = vmatpush2.msra.mxu0 0.0
    %178 = vmatprep.subr.mxu0 0.0
    %179 = vmatpush2.msra.mxu0 0.0
    %180 = vmatprep.subr.mxu0 0.0
    %181 = vmatpush2.msra.mxu0 0.0
    %182 = vmatprep.subr.mxu0 0.0
    %183 = vmatpush2.msra.mxu0 0.0
    %184 = vmatprep.subr.mxu0 0.0
    %185 = vmatpush2.msra.mxu0 0.0
    %186 = vmatprep.subr.mxu0 0.0
    %187 = vmatpush2.msra.mxu0 0.0
    %188 = vmatprep.subr.mxu0 0.0
    %189 = vmatpush2.msra.mxu0 0.0
    %190 = vmatprep.subr.mxu0 0.0
    %191 = vmatpush2.msra.mxu0 0.0
    %192 = vmatprep.subr.mxu0 0.0
    %193 = vmatpush2.msra.mxu0 0.0
    %194 = vmatprep.subr.mxu0 0.0
    %195 = vmatpush2.msra.mxu0 0.0
    %196 = vmatprep.subr.mxu0 0.0
    %197 = vmatpush2.msra.mxu0 0.0
    %198 = vmatprep.subr.mxu0 0.0
    %199 = vmatpush2.msra.mxu0 0.0
    %200 = vmatprep.mubr.f32.mxu0 0.0
    %201 = vmatmul.mubr.f32.gmra.mxu0 %v133
    %v202 = vpop.f32.mrf.mxu0
    %v203 = vadd.f32 0.0, %v202
    %v204 = vpop.f32.mrf.mxu0
    %205 = vdwg.mxu0
    %v206 = vmul.f32 %v133, %v133
    %207 = vmatprep.subr.mxu0 0.0
    %208 = vmatpush1.msra.mxu0 %v44
    %209 = vmatprep.subr.mxu0 0.0
    %210 = vmatpush1.msra.mxu0 %v43
    %211 = vmatprep.subr.mxu0 0.0
    %212 = vmatpush1.msra.mxu0 %v42
    %213 = vmatprep.subr.mxu0 0.0
    %214 = vmatpush1.msra.mxu0 %v41
    %215 = vmatprep.subr.mxu0 0.0
    %216 = vmatpush1.msra.mxu0 %v40
    %217 = vmatprep.subr.mxu0 0.0
    %218 = vmatpush1.msra.mxu0 %v39
    %219 = vmatprep.subr.mxu0 0.0
    %220 = vmatpush1.msra.mxu0 %v38
    %221 = vmatprep.subr.mxu0 0.0
    %222 = vmatpush1.msra.mxu0 %v37
    %223 = vmatprep.subr.mxu0 0.0
    %224 = vmatpush1.msra.mxu0 %v36
    %225 = vmatprep.subr.mxu0 0.0
    %226 = vmatpush1.msra.mxu0 %v35
    %227 = vmatprep.subr.mxu0 0.0
    %228 = vmatpush1.msra.mxu0 %v34
    %229 = vmatprep.subr.mxu0 0.0
    %230 = vmatpush1.msra.mxu0 %v33
    %231 = vmatprep.subr.mxu0 0.0
    %232 = vmatpush1.msra.mxu0 %v32
    %233 = vmatprep.subr.mxu0 0.0
    %234 = vmatpush1.msra.mxu0 %v31
    %235 = vmatprep.subr.mxu0 0.0
    %236 = vmatpush1.msra.mxu0 %v30
    %237 = vmatprep.subr.mxu0 0.0
    %238 = vmatpush1.msra.mxu0 %v29
    %239 = vmatprep.subr.mxu0 0.0
    %240 = vmatpush2.msra.mxu0 0.0
    %241 = vmatprep.subr.mxu0 0.0
    %242 = vmatpush2.msra.mxu0 0.0
    %243 = vmatprep.subr.mxu0 0.0
    %244 = vmatpush2.msra.mxu0 0.0
    %245 = vmatprep.subr.mxu0 0.0
    %246 = vmatpush2.msra.mxu0 0.0
    %247 = vmatprep.subr.mxu0 0.0
    %248 = vmatpush2.msra.mxu0 0.0
    %249 = vmatprep.subr.mxu0 0.0
    %250 = vmatpush2.msra.mxu0 0.0
    %251 = vmatprep.subr.mxu0 0.0
    %252 = vmatpush2.msra.mxu0 0.0
    %253 = vmatprep.subr.mxu0 0.0
    %254 = vmatpush2.msra.mxu0 0.0
    %255 = vmatprep.subr.mxu0 0.0
    %256 = vmatpush2.msra.mxu0 0.0
    %257 = vmatprep.subr.mxu0 0.0
    %258 = vmatpush2.msra.mxu0 0.0
    %259 = vmatprep.subr.mxu0 0.0
    %260 = vmatpush2.msra.mxu0 0.0
    %261 = vmatprep.subr.mxu0 0.0
    %262 = vmatpush2.msra.mxu0 0.0
    %263 = vmatprep.subr.mxu0 0.0
    %264 = vmatpush2.msra.mxu0 0.0
    %265 = vmatprep.subr.mxu0 0.0
    %266 = vmatpush2.msra.mxu0 0.0
    %267 = vmatprep.subr.mxu0 0.0
    %268 = vmatpush2.msra.mxu0 0.0
    %269 = vmatprep.subr.mxu0 0.0
    %270 = vmatpush2.msra.mxu0 0.0
    %271 = vmatprep.mubr.f32.mxu0 0.0
    %272 = vmatmul.mubr.f32.gmra.mxu0 %v206
    %v273 = vpop.f32.mrf.mxu0
    %v274 = vadd.f32 0.0, %v273
    %v275 = vpop.f32.mrf.mxu0
    %276 = vdwg.mxu0
    %v277 = vmul.f32 %v203, %v203
    %v278 = vsub.f32 %v274, %v277
    %v279 = vmax.f32 %v278, 0.0
    %v280 = vsub.f32 %v133, %v203
    %v281 = vadd.f32 %v279, 1e-05
    %v282 = vrsqrt.pop %v281
    %v283 = vmul.f32 %v280, %v282
    %v284 = vmax.f32 %v283, 0.0
    %v285 = vld [vmem:[#allocation2 + $0x80] sm:$0xff]
    %v286 = vld [vmem:[#allocation2 + $0x88] sm:$0xff]
    %v287 = vld [vmem:[#allocation2 + $0x90] sm:$0xff]
    %v288 = vld [vmem:[#allocation2 + $0x98] sm:$0xff]
    %v289 = vld [vmem:[#allocation2 + $0xa0] sm:$0xff]
    %v290 = vld [vmem:[#allocation2 + $0xa8] sm:$0xff]
    %v291 = vld [vmem:[#allocation2 + $0xb0] sm:$0xff]
    %v292 = vld [vmem:[#allocation2 + $0xb8] sm:$0xff]
    %v293 = vld [vmem:[#allocation2 + $0xc0] sm:$0xff]
    %v294 = vld [vmem:[#allocation2 + $0xc8] sm:$0xff]
    %v295 = vld [vmem:[#allocation2 + $0xd0] sm:$0xff]
    %v296 = vld [vmem:[#allocation2 + $0xd8] sm:$0xff]
    %v297 = vld [vmem:[#allocation2 + $0xe0] sm:$0xff]
    %v298 = vld [vmem:[#allocation2 + $0xe8] sm:$0xff]
    %v299 = vld [vmem:[#allocation2 + $0xf0] sm:$0xff]
    %v300 = vld [vmem:[#allocation2 + $0xf8] sm:$0xff]
    %v301 = vlaneseq
    %v302 = vshrl.u32 %v301, 7
    %v303 = vsub.s32 1, %v302
    %v304 = vrot.slane %v28, %v303
    %305 = vmatprep.subr.mxu0 0.0
    %306 = vmatpush1.msra.mxu0 %v300
    %307 = vmatprep.subr.mxu0 0.0
    %308 = vmatpush1.msra.mxu0 %v299
    %309 = vmatprep.subr.mxu0 0.0
    %310 = vmatpush1.msra.mxu0 %v298
    %311 = vmatprep.subr.mxu0 0.0
    %312 = vmatpush1.msra.mxu0 %v297
    %313 = vmatprep.subr.mxu0 0.0
    %314 = vmatpush1.msra.mxu0 %v296
    %315 = vmatprep.subr.mxu0 0.0
    %316 = vmatpush1.msra.mxu0 %v295
    %317 = vmatprep.subr.mxu0 0.0
    %318 = vmatpush1.msra.mxu0 %v294
    %319 = vmatprep.subr.mxu0 0.0
    %320 = vmatpush1.msra.mxu0 %v293
    %321 = vmatprep.subr.mxu0 0.0
    %322 = vmatpush1.msra.mxu0 %v292
    %323 = vmatprep.subr.mxu0 0.0
    %324 = vmatpush1.msra.mxu0 %v291
    %325 = vmatprep.subr.mxu0 0.0
    %326 = vmatpush1.msra.mxu0 %v290
    %327 = vmatprep.subr.mxu0 0.0
    %328 = vmatpush1.msra.mxu0 %v289
    %329 = vmatprep.subr.mxu0 0.0
    %330 = vmatpush1.msra.mxu0 %v288
    %331 = vmatprep.subr.mxu0 0.0
    %332 = vmatpush1.msra.mxu0 %v287
    %333 = vmatprep.subr.mxu0 0.0
    %334 = vmatpush1.msra.mxu0 %v286
    %335 = vmatprep.subr.mxu0 0.0
    %336 = vmatpush1.msra.mxu0 %v285
    %337 = vmatprep.subr.mxu0 0.0
    %338 = vmatpush2.msra.mxu0 0.0
    %339 = vmatprep.subr.mxu0 0.0
    %340 = vmatpush2.msra.mxu0 0.0
    %341 = vmatprep.subr.mxu0 0.0
    %342 = vmatpush2.msra.mxu0 0.0
    %343 = vmatprep.subr.mxu0 0.0
    %344 = vmatpush2.msra.mxu0 0.0
    %345 = vmatprep.subr.mxu0 0.0
    %346 = vmatpush2.msra.mxu0 0.0
    %347 = vmatprep.subr.mxu0 0.0
    %348 = vmatpush2.msra.mxu0 0.0
    %349 = vmatprep.subr.mxu0 0.0
    %350 = vmatpush2.msra.mxu0 0.0
    %351 = vmatprep.subr.mxu0 0.0
    %352 = vmatpush2.msra.mxu0 0.0
    %353 = vmatprep.subr.mxu0 0.0
    %354 = vmatpush2.msra.mxu0 0.0
    %355 = vmatprep.subr.mxu0 0.0
    %356 = vmatpush2.msra.mxu0 0.0
    %357 = vmatprep.subr.mxu0 0.0
    %358 = vmatpush2.msra.mxu0 0.0
    %359 = vmatprep.subr.mxu0 0.0
    %360 = vmatpush2.msra.mxu0 0.0
    %361 = vmatprep.subr.mxu0 0.0
    %362 = vmatpush2.msra.mxu0 0.0
    %363 = vmatprep.subr.mxu0 0.0
    %364 = vmatpush2.msra.mxu0 0.0
    %365 = vmatprep.subr.mxu0 0.0
    %366 = vmatpush2.msra.mxu0 0.0
    %367 = vmatprep.subr.mxu0 0.0
    %368 = vmatpush2.msra.mxu0 0.0
    %369 = vmatprep.mubr.f32.mxu0 0.0
    %370 = vmatmul.mubr.f32.gmra.mxu0 %v284
    %v371 = vpop.f32.mrf.mxu0
    %v372 = vadd.f32 %v304, %v371
    %v373 = vpop.f32.mrf.mxu0
    %374 = vdwg.mxu0
    %375 = vmatprep.subr.mxu0 0.0
    %376 = vmatpush1.msra.mxu0 %v44
    %377 = vmatprep.subr.mxu0 0.0
    %378 = vmatpush1.msra.mxu0 %v43
    %379 = vmatprep.subr.mxu0 0.0
    %380 = vmatpush1.msra.mxu0 %v42
    %381 = vmatprep.subr.mxu0 0.0
    %382 = vmatpush1.msra.mxu0 %v41
    %383 = vmatprep.subr.mxu0 0.0
    %384 = vmatpush1.msra.mxu0 %v40
    %385 = vmatprep.subr.mxu0 0.0
    %386 = vmatpush1.msra.mxu0 %v39
    %387 = vmatprep.subr.mxu0 0.0
    %388 = vmatpush1.msra.mxu0 %v38
    %389 = vmatprep.subr.mxu0 0.0
    %390 = vmatpush1.msra.mxu0 %v37
    %391 = vmatprep.subr.mxu0 0.0
    %392 = vmatpush1.msra.mxu0 %v36
    %393 = vmatprep.subr.mxu0 0.0
    %394 = vmatpush1.msra.mxu0 %v35
    %395 = vmatprep.subr.mxu0 0.0
    %396 = vmatpush1.msra.mxu0 %v34
    %397 = vmatprep.subr.mxu0 0.0
    %398 = vmatpush1.msra.mxu0 %v33
    %399 = vmatprep.subr.mxu0 0.0
    %400 = vmatpush1.msra.mxu0 %v32
    %401 = vmatprep.subr.mxu0 0.0
    %402 = vmatpush1.msra.mxu0 %v31
    %403 = vmatprep.subr.mxu0 0.0
    %404 = vmatpush1.msra.mxu0 %v30
    %405 = vmatprep.subr.mxu0 0.0
    %406 = vmatpush1.msra.mxu0 %v29
    %407 = vmatprep.subr.mxu0 0.0
    %408 = vmatpush2.msra.mxu0 0.0
    %409 = vmatprep.subr.mxu0 0.0
    %410 = vmatpush2.msra.mxu0 0.0
    %411 = vmatprep.subr.mxu0 0.0
    %412 = vmatpush2.msra.mxu0 0.0
    %413 = vmatprep.subr.mxu0 0.0
    %414 = vmatpush2.msra.mxu0 0.0
    %415 = vmatprep.subr.mxu0 0.0
    %416 = vmatpush2.msra.mxu0 0.0
    %417 = vmatprep.subr.mxu0 0.0
    %418 = vmatpush2.msra.mxu0 0.0
    %419 = vmatprep.subr.mxu0 0.0
    %420 = vmatpush2.msra.mxu0 0.0
    %421 = vmatprep.subr.mxu0 0.0
    %422 = vmatpush2.msra.mxu0 0.0
    %423 = vmatprep.subr.mxu0 0.0
    %424 = vmatpush2.msra.mxu0 0.0
    %425 = vmatprep.subr.mxu0 0.0
    %426 = vmatpush2.msra.mxu0 0.0
    %427 = vmatprep.subr.mxu0 0.0
    %428 = vmatpush2.msra.mxu0 0.0
    %429 = vmatprep.subr.mxu0 0.0
    %430 = vmatpush2.msra.mxu0 0.0
    %431 = vmatprep.subr.mxu0 0.0
    %432 = vmatpush2.msra.mxu0 0.0
    %433 = vmatprep.subr.mxu0 0.0
    %434 = vmatpush2.msra.mxu0 0.0
    %435 = vmatprep.subr.mxu0 0.0
    %436 = vmatpush2.msra.mxu0 0.0
    %437 = vmatprep.subr.mxu0 0.0
    %438 = vmatpush2.msra.mxu0 0.0
    %439 = vmatprep.mubr.f32.mxu0 0.0
    %440 = vmatmul.mubr.f32.gmra.mxu0 %v372
    %v441 = vpop.f32.mrf.mxu0
    %v442 = vadd.f32 0.0, %v441
    %v443 = vpop.f32.mrf.mxu0
    %444 = vdwg.mxu0
    %v445 = vmul.f32 %v372, %v372
    %446 = vmatprep.subr.mxu0 0.0
    %447 = vmatpush1.msra.mxu0 %v44
    %448 = vmatprep.subr.mxu0 0.0
    %449 = vmatpush1.msra.mxu0 %v43
    %450 = vmatprep.subr.mxu0 0.0
    %451 = vmatpush1.msra.mxu0 %v42
    %452 = vmatprep.subr.mxu0 0.0
    %453 = vmatpush1.msra.mxu0 %v41
    %454 = vmatprep.subr.mxu0 0.0
    %455 = vmatpush1.msra.mxu0 %v40
    %456 = vmatprep.subr.mxu0 0.0
    %457 = vmatpush1.msra.mxu0 %v39
    %458 = vmatprep.subr.mxu0 0.0
    %459 = vmatpush1.msra.mxu0 %v38
    %460 = vmatprep.subr.mxu0 0.0
    %461 = vmatpush1.msra.mxu0 %v37
    %462 = vmatprep.subr.mxu0 0.0
    %463 = vmatpush1.msra.mxu0 %v36
    %464 = vmatprep.subr.mxu0 0.0
    %465 = vmatpush1.msra.mxu0 %v35
    %466 = vmatprep.subr.mxu0 0.0
    %467 = vmatpush1.msra.mxu0 %v34
    %468 = vmatprep.subr.mxu0 0.0
    %469 = vmatpush1.msra.mxu0 %v33
    %470 = vmatprep.subr.mxu0 0.0
    %471 = vmatpush1.msra.mxu0 %v32
    %472 = vmatprep.subr.mxu0 0.0
    %473 = vmatpush1.msra.mxu0 %v31
    %474 = vmatprep.subr.mxu0 0.0
    %475 = vmatpush1.msra.mxu0 %v30
    %476 = vmatprep.subr.mxu0 0.0
    %477 = vmatpush1.msra.mxu0 %v29
    %478 = vmatprep.subr.mxu0 0.0
    %479 = vmatpush2.msra.mxu0 0.0
    %480 = vmatprep.subr.mxu0 0.0
    %481 = vmatpush2.msra.mxu0 0.0
    %482 = vmatprep.subr.mxu0 0.0
    %483 = vmatpush2.msra.mxu0 0.0
    %484 = vmatprep.subr.mxu0 0.0
    %485 = vmatpush2.msra.mxu0 0.0
    %486 = vmatprep.subr.mxu0 0.0
    %487 = vmatpush2.msra.mxu0 0.0
    %488 = vmatprep.subr.mxu0 0.0
    %489 = vmatpush2.msra.mxu0 0.0
    %490 = vmatprep.subr.mxu0 0.0
    %491 = vmatpush2.msra.mxu0 0.0
    %492 = vmatprep.subr.mxu0 0.0
    %493 = vmatpush2.msra.mxu0 0.0
    %494 = vmatprep.subr.mxu0 0.0
    %495 = vmatpush2.msra.mxu0 0.0
    %496 = vmatprep.subr.mxu0 0.0
    %497 = vmatpush2.msra.mxu0 0.0
    %498 = vmatprep.subr.mxu0 0.0
    %499 = vmatpush2.msra.mxu0 0.0
    %500 = vmatprep.subr.mxu0 0.0
    %501 = vmatpush2.msra.mxu0 0.0
    %502 = vmatprep.subr.mxu0 0.0
    %503 = vmatpush2.msra.mxu0 0.0
    %504 = vmatprep.subr.mxu0 0.0
    %505 = vmatpush2.msra.mxu0 0.0
    %506 = vmatprep.subr.mxu0 0.0
    %507 = vmatpush2.msra.mxu0 0.0
    %508 = vmatprep.subr.mxu0 0.0
    %509 = vmatpush2.msra.mxu0 0.0
    %510 = vmatprep.mubr.f32.mxu0 0.0
    %511 = vmatmul.mubr.f32.gmra.mxu0 %v445
    %v512 = vpop.f32.mrf.mxu0
    %v513 = vadd.f32 0.0, %v512
    %v514 = vpop.f32.mrf.mxu0
    %515 = vdwg.mxu0
    %v516 = vmul.f32 %v442, %v442
    %v517 = vsub.f32 %v513, %v516
    %v518 = vmax.f32 %v517, 0.0
    %v519 = vsub.f32 %v372, %v442
    %v520 = vadd.f32 %v518, 1e-05
    %v521 = vrsqrt.pop %v520
    %v522 = vmul.f32 %v519, %v521
    %v523 = vmax.f32 %v522, 0.0
    %v524 = vld [vmem:[#allocation2 + $0x100] sm:$0xff]
    %v525 = vld [vmem:[#allocation2 + $0x108] sm:$0xff]
    %v526 = vld [vmem:[#allocation2 + $0x110] sm:$0xff]
    %v527 = vld [vmem:[#allocation2 + $0x118] sm:$0xff]
    %v528 = vld [vmem:[#allocation2 + $0x120] sm:$0xff]
    %v529 = vld [vmem:[#allocation2 + $0x128] sm:$0xff]
    %v530 = vld [vmem:[#allocation2 + $0x130] sm:$0xff]
    %v531 = vld [vmem:[#allocation2 + $0x138] sm:$0xff]
    %v532 = vld [vmem:[#allocation2 + $0x140] sm:$0xff]
    %v533 = vld [vmem:[#allocation2 + $0x148] sm:$0xff]
    %v534 = vld [vmem:[#allocation2 + $0x150] sm:$0xff]
    %v535 = vld [vmem:[#allocation2 + $0x158] sm:$0xff]
    %v536 = vld [vmem:[#allocation2 + $0x160] sm:$0xff]
    %v537 = vld [vmem:[#allocation2 + $0x168] sm:$0xff]
    %v538 = vld [vmem:[#allocation2 + $0x170] sm:$0xff]
    %v539 = vld [vmem:[#allocation2 + $0x178] sm:$0xff]
    %v540 = vlaneseq
    %v541 = vshrl.u32 %v540, 7
    %v542 = vsub.s32 2, %v541
    %v543 = vrot.slane %v28, %v542
    %544 = vmatprep.subr.mxu0 0.0
    %545 = vmatpush1.msra.mxu0 %v539
    %546 = vmatprep.subr.mxu0 0.0
    %547 = vmatpush1.msra.mxu0 %v538
    %548 = vmatprep.subr.mxu0 0.0
    %549 = vmatpush1.msra.mxu0 %v537
    %550 = vmatprep.subr.mxu0 0.0
    %551 = vmatpush1.msra.mxu0 %v536
    %552 = vmatprep.subr.mxu0 0.0
    %553 = vmatpush1.msra.mxu0 %v535
    %554 = vmatprep.subr.mxu0 0.0
    %555 = vmatpush1.msra.mxu0 %v534
    %556 = vmatprep.subr.mxu0 0.0
    %557 = vmatpush1.msra.mxu0 %v533
    %558 = vmatprep.subr.mxu0 0.0
    %559 = vmatpush1.msra.mxu0 %v532
    %560 = vmatprep.subr.mxu0 0.0
    %561 = vmatpush1.msra.mxu0 %v531
    %562 = vmatprep.subr.mxu0 0.0
    %563 = vmatpush1.msra.mxu0 %v530
    %564 = vmatprep.subr.mxu0 0.0
    %565 = vmatpush1.msra.mxu0 %v529
    %566 = vmatprep.subr.mxu0 0.0
    %567 = vmatpush1.msra.mxu0 %v528
    %568 = vmatprep.subr.mxu0 0.0
    %569 = vmatpush1.msra.mxu0 %v527
    %570 = vmatprep.subr.mxu0 0.0
    %571 = vmatpush1.msra.mxu0 %v526
    %572 = vmatprep.subr.mxu0 0.0
    %573 = vmatpush1.msra.mxu0 %v525
    %574 = vmatprep.subr.mxu0 0.0
    %575 = vmatpush1.msra.mxu0 %v524
    %576 = vmatprep.subr.mxu0 0.0
    %577 = vmatpush2.msra.mxu0 0.0
    %578 = vmatprep.subr.mxu0 0.0
    %579 = vmatpush2.msra.mxu0 0.0
    %580 = vmatprep.subr.mxu0 0.0
    %581 = vmatpush2.msra.mxu0 0.0
    %582 = vmatprep.subr.mxu0 0.0
    %583 = vmatpush2.msra.mxu0 0.0
    %584 = vmatprep.subr.mxu0 0.0
    %585 = vmatpush2.msra.mxu0 0.0
    %586 = vmatprep.subr.mxu0 0.0
    %587 = vmatpush2.msra.mxu0 0.0
    %588 = vmatprep.subr.mxu0 0.0
    %589 = vmatpush2.msra.mxu0 0.0
    %590 = vmatprep.subr.mxu0 0.0
    %591 = vmatpush2.msra.mxu0 0.0
    %592 = vmatprep.subr.mxu0 0.0
    %593 = vmatpush2.msra.mxu0 0.0
    %594 = vmatprep.subr.mxu0 0.0
    %595 = vmatpush2.msra.mxu0 0.0
    %596 = vmatprep.subr.mxu0 0.0
    %597 = vmatpush2.msra.mxu0 0.0
    %598 = vmatprep.subr.mxu0 0.0
    %599 = vmatpush2.msra.mxu0 0.0
    %600 = vmatprep.subr.mxu0 0.0
    %601 = vmatpush2.msra.mxu0 0.0
    %602 = vmatprep.subr.mxu0 0.0
    %603 = vmatpush2.msra.mxu0 0.0
    %604 = vmatprep.subr.mxu0 0.0
    %605 = vmatpush2.msra.mxu0 0.0
    %606 = vmatprep.subr.mxu0 0.0
    %607 = vmatpush2.msra.mxu0 0.0
    %608 = vmatprep.mubr.f32.mxu0 0.0
    %609 = vmatmul.mubr.f32.gmra.mxu0 %v523
    %v610 = vpop.f32.mrf.mxu0
    %v611 = vadd.f32 %v543, %v610
    %v612 = vpop.f32.mrf.mxu0
    %613 = vdwg.mxu0
    %614 = vmatprep.subr.mxu0 0.0
    %615 = vmatpush1.msra.mxu0 %v44
    %616 = vmatprep.subr.mxu0 0.0
    %617 = vmatpush1.msra.mxu0 %v43
    %618 = vmatprep.subr.mxu0 0.0
    %619 = vmatpush1.msra.mxu0 %v42
    %620 = vmatprep.subr.mxu0 0.0
    %621 = vmatpush1.msra.mxu0 %v41
    %622 = vmatprep.subr.mxu0 0.0
    %623 = vmatpush1.msra.mxu0 %v40
    %624 = vmatprep.subr.mxu0 0.0
    %625 = vmatpush1.msra.mxu0 %v39
    %626 = vmatprep.subr.mxu0 0.0
    %627 = vmatpush1.msra.mxu0 %v38
    %628 = vmatprep.subr.mxu0 0.0
    %629 = vmatpush1.msra.mxu0 %v37
    %630 = vmatprep.subr.mxu0 0.0
    %631 = vmatpush1.msra.mxu0 %v36
    %632 = vmatprep.subr.mxu0 0.0
    %633 = vmatpush1.msra.mxu0 %v35
    %634 = vmatprep.subr.mxu0 0.0
    %635 = vmatpush1.msra.mxu0 %v34
    %636 = vmatprep.subr.mxu0 0.0
    %637 = vmatpush1.msra.mxu0 %v33
    %638 = vmatprep.subr.mxu0 0.0
    %639 = vmatpush1.msra.mxu0 %v32
    %640 = vmatprep.subr.mxu0 0.0
    %641 = vmatpush1.msra.mxu0 %v31
    %642 = vmatprep.subr.mxu0 0.0
    %643 = vmatpush1.msra.mxu0 %v30
    %644 = vmatprep.subr.mxu0 0.0
    %645 = vmatpush1.msra.mxu0 %v29
    %646 = vmatprep.subr.mxu0 0.0
    %647 = vmatpush2.msra.mxu0 0.0
    %648 = vmatprep.subr.mxu0 0.0
    %649 = vmatpush2.msra.mxu0 0.0
    %650 = vmatprep.subr.mxu0 0.0
    %651 = vmatpush2.msra.mxu0 0.0
    %652 = vmatprep.subr.mxu0 0.0
    %653 = vmatpush2.msra.mxu0 0.0
    %654 = vmatprep.subr.mxu0 0.0
    %655 = vmatpush2.msra.mxu0 0.0
    %656 = vmatprep.subr.mxu0 0.0
    %657 = vmatpush2.msra.mxu0 0.0
    %658 = vmatprep.subr.mxu0 0.0
    %659 = vmatpush2.msra.mxu0 0.0
    %660 = vmatprep.subr.mxu0 0.0
    %661 = vmatpush2.msra.mxu0 0.0
    %662 = vmatprep.subr.mxu0 0.0
    %663 = vmatpush2.msra.mxu0 0.0
    %664 = vmatprep.subr.mxu0 0.0
    %665 = vmatpush2.msra.mxu0 0.0
    %666 = vmatprep.subr.mxu0 0.0
    %667 = vmatpush2.msra.mxu0 0.0
    %668 = vmatprep.subr.mxu0 0.0
    %669 = vmatpush2.msra.mxu0 0.0
    %670 = vmatprep.subr.mxu0 0.0
    %671 = vmatpush2.msra.mxu0 0.0
    %672 = vmatprep.subr.mxu0 0.0
    %673 = vmatpush2.msra.mxu0 0.0
    %674 = vmatprep.subr.mxu0 0.0
    %675 = vmatpush2.msra.mxu0 0.0
    %676 = vmatprep.subr.mxu0 0.0
    %677 = vmatpush2.msra.mxu0 0.0
    %678 = vmatprep.mubr.f32.mxu0 0.0
    %679 = vmatmul.mubr.f32.gmra.mxu0 %v611
    %v680 = vpop.f32.mrf.mxu0
    %v681 = vadd.f32 0.0, %v680
    %v682 = vpop.f32.mrf.mxu0
    %683 = vdwg.mxu0
    %v684 = vmul.f32 %v611, %v611
    %685 = vmatprep.subr.mxu0 0.0
    %686 = vmatpush1.msra.mxu0 %v44
    %687 = vmatprep.subr.mxu0 0.0
    %688 = vmatpush1.msra.mxu0 %v43
    %689 = vmatprep.subr.mxu0 0.0
    %690 = vmatpush1.msra.mxu0 %v42
    %691 = vmatprep.subr.mxu0 0.0
    %692 = vmatpush1.msra.mxu0 %v41
    %693 = vmatprep.subr.mxu0 0.0
    %694 = vmatpush1.msra.mxu0 %v40
    %695 = vmatprep.subr.mxu0 0.0
    %696 = vmatpush1.msra.mxu0 %v39
    %697 = vmatprep.subr.mxu0 0.0
    %698 = vmatpush1.msra.mxu0 %v38
    %699 = vmatprep.subr.mxu0 0.0
    %700 = vmatpush1.msra.mxu0 %v37
    %701 = vmatprep.subr.mxu0 0.0
    %702 = vmatpush1.msra.mxu0 %v36
    %703 = vmatprep.subr.mxu0 0.0
    %704 = vmatpush1.msra.mxu0 %v35
    %705 = vmatprep.subr.mxu0 0.0
    %706 = vmatpush1.msra.mxu0 %v34
    %707 = vmatprep.subr.mxu0 0.0
    %708 = vmatpush1.msra.mxu0 %v33
    %709 = vmatprep.subr.mxu0 0.0
    %710 = vmatpush1.msra.mxu0 %v32
    %711 = vmatprep.subr.mxu0 0.0
    %712 = vmatpush1.msra.mxu0 %v31
    %713 = vmatprep.subr.mxu0 0.0
    %714 = vmatpush1.msra.mxu0 %v30
    %715 = vmatprep.subr.mxu0 0.0
    %716 = vmatpush1.msra.mxu0 %v29
    %717 = vmatprep.subr.mxu0 0.0
    %718 = vmatpush2.msra.mxu0 0.0
    %719 = vmatprep.subr.mxu0 0.0
    %720 = vmatpush2.msra.mxu0 0.0
    %721 = vmatprep.subr.mxu0 0.0
    %722 = vmatpush2.msra.mxu0 0.0
    %723 = vmatprep.subr.mxu0 0.0
    %724 = vmatpush2.msra.mxu0 0.0
    %725 = vmatprep.subr.mxu0 0.0
    %726 = vmatpush2.msra.mxu0 0.0
    %727 = vmatprep.subr.mxu0 0.0
    %728 = vmatpush2.msra.mxu0 0.0
    %729 = vmatprep.subr.mxu0 0.0
    %730 = vmatpush2.msra.mxu0 0.0
    %731 = vmatprep.subr.mxu0 0.0
    %732 = vmatpush2.msra.mxu0 0.0
    %733 = vmatprep.subr.mxu0 0.0
    %734 = vmatpush2.msra.mxu0 0.0
    %735 = vmatprep.subr.mxu0 0.0
    %736 = vmatpush2.msra.mxu0 0.0
    %737 = vmatprep.subr.mxu0 0.0
    %738 = vmatpush2.msra.mxu0 0.0
    %739 = vmatprep.subr.mxu0 0.0
    %740 = vmatpush2.msra.mxu0 0.0
    %741 = vmatprep.subr.mxu0 0.0
    %742 = vmatpush2.msra.mxu0 0.0
    %743 = vmatprep.subr.mxu0 0.0
    %744 = vmatpush2.msra.mxu0 0.0
    %745 = vmatprep.subr.mxu0 0.0
    %746 = vmatpush2.msra.mxu0 0.0
    %747 = vmatprep.subr.mxu0 0.0
    %748 = vmatpush2.msra.mxu0 0.0
    %749 = vmatprep.mubr.f32.mxu0 0.0
    %750 = vmatmul.mubr.f32.gmra.mxu0 %v684
    %v751 = vpop.f32.mrf.mxu0
    %v752 = vadd.f32 0.0, %v751
    %v753 = vpop.f32.mrf.mxu0
    %754 = vdwg.mxu0
    %v755 = vmul.f32 %v681, %v681
    %v756 = vsub.f32 %v752, %v755
    %v757 = vmax.f32 %v756, 0.0
    %v758 = vsub.f32 %v611, %v681
    %v759 = vadd.f32 %v757, 1e-05
    %v760 = vrsqrt.pop %v759
    %v761 = vmul.f32 %v758, %v760
    %v762 = vadd.f32 %v761, %v284
    %v763 = vmax.f32 %v762, 0.0
    %v764 = vld [vmem:[#allocation2 + $0x180] sm:$0xff]
    %v765 = vld [vmem:[#allocation2 + $0x188] sm:$0xff]
    %v766 = vld [vmem:[#allocation2 + $0x190] sm:$0xff]
    %v767 = vld [vmem:[#allocation2 + $0x198] sm:$0xff]
    %v768 = vld [vmem:[#allocation2 + $0x1a0] sm:$0xff]
    %v769 = vld [vmem:[#allocation2 + $0x1a8] sm:$0xff]
    %v770 = vld [vmem:[#allocation2 + $0x1b0] sm:$0xff]
    %v771 = vld [vmem:[#allocation2 + $0x1b8] sm:$0xff]
    %v772 = vld [vmem:[#allocation2 + $0x1c0] sm:$0xff]
    %v773 = vld [vmem:[#allocation2 + $0x1c8] sm:$0xff]
    %v774 = vld [vmem:[#allocation2 + $0x1d0] sm:$0xff]
    %v775 = vld [vmem:[#allocation2 + $0x1d8] sm:$0xff]
    %v776 = vld [vmem:[#allocation2 + $0x1e0] sm:$0xff]
    %v777 = vld [vmem:[#allocation2 + $0x1e8] sm:$0xff]
    %v778 = vld [vmem:[#allocation2 + $0x1f0] sm:$0xff]
    %v779 = vld [vmem:[#allocation2 + $0x1f8] sm:$0xff]
    %v780 = vlaneseq
    %v781 = vshrl.u32 %v780, 7
    %v782 = vsub.s32 3, %v781
    %v783 = vrot.slane %v28, %v782
    %784 = vmatprep.subr.mxu0 0.0
    %785 = vmatpush1.msra.mxu0 %v779
    %786 = vmatprep.subr.mxu0 0.0
    %787 = vmatpush1.msra.mxu0 %v778
    %788 = vmatprep.subr.mxu0 0.0
    %789 = vmatpush1.msra.mxu0 %v777
    %790 = vmatprep.subr.mxu0 0.0
    %791 = vmatpush1.msra.mxu0 %v776
    %792 = vmatprep.subr.mxu0 0.0
    %793 = vmatpush1.msra.mxu0 %v775
    %794 = vmatprep.subr.mxu0 0.0
    %795 = vmatpush1.msra.mxu0 %v774
    %796 = vmatprep.subr.mxu0 0.0
    %797 = vmatpush1.msra.mxu0 %v773
    %798 = vmatprep.subr.mxu0 0.0
    %799 = vmatpush1.msra.mxu0 %v772
    %800 = vmatprep.subr.mxu0 0.0
    %801 = vmatpush1.msra.mxu0 %v771
    %802 = vmatprep.subr.mxu0 0.0
    %803 = vmatpush1.msra.mxu0 %v770
    %804 = vmatprep.subr.mxu0 0.0
    %805 = vmatpush1.msra.mxu0 %v769
    %806 = vmatprep.subr.mxu0 0.0
    %807 = vmatpush1.msra.mxu0 %v768
    %808 = vmatprep.subr.mxu0 0.0
    %809 = vmatpush1.msra.mxu0 %v767
    %810 = vmatprep.subr.mxu0 0.0
    %811 = vmatpush1.msra.mxu0 %v766
    %812 = vmatprep.subr.mxu0 0.0
    %813 = vmatpush1.msra.mxu0 %v765
    %814 = vmatprep.subr.mxu0 0.0
    %815 = vmatpush1.msra.mxu0 %v764
    %816 = vmatprep.subr.mxu0 0.0
    %817 = vmatpush2.msra.mxu0 0.0
    %818 = vmatprep.subr.mxu0 0.0
    %819 = vmatpush2.msra.mxu0 0.0
    %820 = vmatprep.subr.mxu0 0.0
    %821 = vmatpush2.msra.mxu0 0.0
    %822 = vmatprep.subr.mxu0 0.0
    %823 = vmatpush2.msra.mxu0 0.0
    %824 = vmatprep.subr.mxu0 0.0
    %825 = vmatpush2.msra.mxu0 0.0
    %826 = vmatprep.subr.mxu0 0.0
    %827 = vmatpush2.msra.mxu0 0.0
    %828 = vmatprep.subr.mxu0 0.0
    %829 = vmatpush2.msra.mxu0 0.0
    %830 = vmatprep.subr.mxu0 0.0
    %831 = vmatpush2.msra.mxu0 0.0
    %832 = vmatprep.subr.mxu0 0.0
    %833 = vmatpush2.msra.mxu0 0.0
    %834 = vmatprep.subr.mxu0 0.0
    %835 = vmatpush2.msra.mxu0 0.0
    %836 = vmatprep.subr.mxu0 0.0
    %837 = vmatpush2.msra.mxu0 0.0
    %838 = vmatprep.subr.mxu0 0.0
    %839 = vmatpush2.msra.mxu0 0.0
    %840 = vmatprep.subr.mxu0 0.0
    %841 = vmatpush2.msra.mxu0 0.0
    %842 = vmatprep.subr.mxu0 0.0
    %843 = vmatpush2.msra.mxu0 0.0
    %844 = vmatprep.subr.mxu0 0.0
    %845 = vmatpush2.msra.mxu0 0.0
    %846 = vmatprep.subr.mxu0 0.0
    %847 = vmatpush2.msra.mxu0 0.0
    %848 = vmatprep.mubr.f32.mxu0 0.0
    %849 = vmatmul.mubr.f32.gmra.mxu0 %v763
    %v850 = vpop.f32.mrf.mxu0
    %v851 = vadd.f32 %v783, %v850
    %v852 = vpop.f32.mrf.mxu0
    %853 = vdwg.mxu0
    %854 = vmatprep.subr.mxu0 0.0
    %855 = vmatpush1.msra.mxu0 %v44
    %856 = vmatprep.subr.mxu0 0.0
    %857 = vmatpush1.msra.mxu0 %v43
    %858 = vmatprep.subr.mxu0 0.0
    %859 = vmatpush1.msra.mxu0 %v42
    %860 = vmatprep.subr.mxu0 0.0
    %861 = vmatpush1.msra.mxu0 %v41
    %862 = vmatprep.subr.mxu0 0.0
    %863 = vmatpush1.msra.mxu0 %v40
    %864 = vmatprep.subr.mxu0 0.0
    %865 = vmatpush1.msra.mxu0 %v39
    %866 = vmatprep.subr.mxu0 0.0
    %867 = vmatpush1.msra.mxu0 %v38
    %868 = vmatprep.subr.mxu0 0.0
    %869 = vmatpush1.msra.mxu0 %v37
    %870 = vmatprep.subr.mxu0 0.0
    %871 = vmatpush1.msra.mxu0 %v36
    %872 = vmatprep.subr.mxu0 0.0
    %873 = vmatpush1.msra.mxu0 %v35
    %874 = vmatprep.subr.mxu0 0.0
    %875 = vmatpush1.msra.mxu0 %v34
    %876 = vmatprep.subr.mxu0 0.0
    %877 = vmatpush1.msra.mxu0 %v33
    %878 = vmatprep.subr.mxu0 0.0
    %879 = vmatpush1.msra.mxu0 %v32
    %880 = vmatprep.subr.mxu0 0.0
    %881 = vmatpush1.msra.mxu0 %v31
    %882 = vmatprep.subr.mxu0 0.0
    %883 = vmatpush1.msra.mxu0 %v30
    %884 = vmatprep.subr.mxu0 0.0
    %885 = vmatpush1.msra.mxu0 %v29
    %886 = vmatprep.subr.mxu0 0.0
    %887 = vmatpush2.msra.mxu0 0.0
    %888 = vmatprep.subr.mxu0 0.0
    %889 = vmatpush2.msra.mxu0 0.0
    %890 = vmatprep.subr.mxu0 0.0
    %891 = vmatpush2.msra.mxu0 0.0
    %892 = vmatprep.subr.mxu0 0.0
    %893 = vmatpush2.msra.mxu0 0.0
    %894 = vmatprep.subr.mxu0 0.0
    %895 = vmatpush2.msra.mxu0 0.0
    %896 = vmatprep.subr.mxu0 0.0
    %897 = vmatpush2.msra.mxu0 0.0
    %898 = vmatprep.subr.mxu0 0.0
    %899 = vmatpush2.msra.mxu0 0.0
    %900 = vmatprep.subr.mxu0 0.0
    %901 = vmatpush2.msra.mxu0 0.0
    %902 = vmatprep.subr.mxu0 0.0
    %903 = vmatpush2.msra.mxu0 0.0
    %904 = vmatprep.subr.mxu0 0.0
    %905 = vmatpush2.msra.mxu0 0.0
    %906 = vmatprep.subr.mxu0 0.0
    %907 = vmatpush2.msra.mxu0 0.0
    %908 = vmatprep.subr.mxu0 0.0
    %909 = vmatpush2.msra.mxu0 0.0
    %910 = vmatprep.subr.mxu0 0.0
    %911 = vmatpush2.msra.mxu0 0.0
    %912 = vmatprep.subr.mxu0 0.0
    %913 = vmatpush2.msra.mxu0 0.0
    %914 = vmatprep.subr.mxu0 0.0
    %915 = vmatpush2.msra.mxu0 0.0
    %916 = vmatprep.subr.mxu0 0.0
    %917 = vmatpush2.msra.mxu0 0.0
    %918 = vmatprep.mubr.f32.mxu0 0.0
    %919 = vmatmul.mubr.f32.gmra.mxu0 %v851
    %v920 = vpop.f32.mrf.mxu0
    %v921 = vadd.f32 0.0, %v920
    %v922 = vpop.f32.mrf.mxu0
    %923 = vdwg.mxu0
    %v924 = vmul.f32 %v851, %v851
    %925 = vmatprep.subr.mxu0 0.0
    %926 = vmatpush1.msra.mxu0 %v44
    %927 = vmatprep.subr.mxu0 0.0
    %928 = vmatpush1.msra.mxu0 %v43
    %929 = vmatprep.subr.mxu0 0.0
    %930 = vmatpush1.msra.mxu0 %v42
    %931 = vmatprep.subr.mxu0 0.0
    %932 = vmatpush1.msra.mxu0 %v41
    %933 = vmatprep.subr.mxu0 0.0
    %934 = vmatpush1.msra.mxu0 %v40
    %935 = vmatprep.subr.mxu0 0.0
    %936 = vmatpush1.msra.mxu0 %v39
    %937 = vmatprep.subr.mxu0 0.0
    %938 = vmatpush1.msra.mxu0 %v38
    %939 = vmatprep.subr.mxu0 0.0
    %940 = vmatpush1.msra.mxu0 %v37
    %941 = vmatprep.subr.mxu0 0.0
    %942 = vmatpush1.msra.mxu0 %v36
    %943 = vmatprep.subr.mxu0 0.0
    %944 = vmatpush1.msra.mxu0 %v35
    %945 = vmatprep.subr.mxu0 0.0
    %946 = vmatpush1.msra.mxu0 %v34
    %947 = vmatprep.subr.mxu0 0.0
    %948 = vmatpush1.msra.mxu0 %v33
    %949 = vmatprep.subr.mxu0 0.0
    %950 = vmatpush1.msra.mxu0 %v32
    %951 = vmatprep.subr.mxu0 0.0
    %952 = vmatpush1.msra.mxu0 %v31
    %953 = vmatprep.subr.mxu0 0.0
    %954 = vmatpush1.msra.mxu0 %v30
    %955 = vmatprep.subr.mxu0 0.0
    %956 = vmatpush1.msra.mxu0 %v29
    %957 = vmatprep.subr.mxu0 0.0
    %958 = vmatpush2.msra.mxu0 0.0
    %959 = vmatprep.subr.mxu0 0.0
    %960 = vmatpush2.msra.mxu0 0.0
    %961 = vmatprep.subr.mxu0 0.0
    %962 = vmatpush2.msra.mxu0 0.0
    %963 = vmatprep.subr.mxu0 0.0
    %964 = vmatpush2.msra.mxu0 0.0
    %965 = vmatprep.subr.mxu0 0.0
    %966 = vmatpush2.msra.mxu0 0.0
    %967 = vmatprep.subr.mxu0 0.0
    %968 = vmatpush2.msra.mxu0 0.0
    %969 = vmatprep.subr.mxu0 0.0
    %970 = vmatpush2.msra.mxu0 0.0
    %971 = vmatprep.subr.mxu0 0.0
    %972 = vmatpush2.msra.mxu0 0.0
    %973 = vmatprep.subr.mxu0 0.0
    %974 = vmatpush2.msra.mxu0 0.0
    %975 = vmatprep.subr.mxu0 0.0
    %976 = vmatpush2.msra.mxu0 0.0
    %977 = vmatprep.subr.mxu0 0.0
    %978 = vmatpush2.msra.mxu0 0.0
    %979 = vmatprep.subr.mxu0 0.0
    %980 = vmatpush2.msra.mxu0 0.0
    %981 = vmatprep.subr.mxu0 0.0
    %982 = vmatpush2.msra.mxu0 0.0
    %983 = vmatprep.subr.mxu0 0.0
    %984 = vmatpush2.msra.mxu0 0.0
    %985 = vmatprep.subr.mxu0 0.0
    %986 = vmatpush2.msra.mxu0 0.0
    %987 = vmatprep.subr.mxu0 0.0
    %988 = vmatpush2.msra.mxu0 0.0
    %989 = vmatprep.mubr.f32.mxu0 0.0
    %990 = vmatmul.mubr.f32.gmra.mxu0 %v924
    %v991 = vpop.f32.mrf.mxu0
    %v992 = vadd.f32 0.0, %v991
    %v993 = vpop.f32.mrf.mxu0
    %994 = vdwg.mxu0
    %v995 = vmul.f32 %v921, %v921
    %v996 = vsub.f32 %v992, %v995
    %v997 = vmax.f32 %v996, 0.0
    %v998 = vsub.f32 %v851, %v921
    %v999 = vadd.f32 %v997, 1e-05
    %v1000 = vrsqrt.pop %v999
    %v1001 = vmul.f32 %v998, %v1000
    %v1002 = vmax.f32 %v1001, 0.0
    %v1003 = vld [vmem:[#allocation2 + $0x200] sm:$0xff]
    %v1004 = vld [vmem:[#allocation2 + $0x208] sm:$0xff]
    %v1005 = vld [vmem:[#allocation2 + $0x210] sm:$0xff]
    %v1006 = vld [vmem:[#allocation2 + $0x218] sm:$0xff]
    %v1007 = vld [vmem:[#allocation2 + $0x220] sm:$0xff]
    %v1008 = vld [vmem:[#allocation2 + $0x228] sm:$0xff]
    %v1009 = vld [vmem:[#allocation2 + $0x230] sm:$0xff]
    %v1010 = vld [vmem:[#allocation2 + $0x238] sm:$0xff]
    %v1011 = vld [vmem:[#allocation2 + $0x240] sm:$0xff]
    %v1012 = vld [vmem:[#allocation2 + $0x248] sm:$0xff]
    %v1013 = vld [vmem:[#allocation2 + $0x250] sm:$0xff]
    %v1014 = vld [vmem:[#allocation2 + $0x258] sm:$0xff]
    %v1015 = vld [vmem:[#allocation2 + $0x260] sm:$0xff]
    %v1016 = vld [vmem:[#allocation2 + $0x268] sm:$0xff]
    %v1017 = vld [vmem:[#allocation2 + $0x270] sm:$0xff]
    %v1018 = vld [vmem:[#allocation2 + $0x278] sm:$0xff]
    %v1019 = vlaneseq
    %v1020 = vshrl.u32 %v1019, 7
    %v1021 = vsub.s32 4, %v1020
    %v1022 = vrot.slane %v28, %v1021
    %1023 = vmatprep.subr.mxu0 0.0
    %1024 = vmatpush1.msra.mxu0 %v1018
    %1025 = vmatprep.subr.mxu0 0.0
    %1026 = vmatpush1.msra.mxu0 %v1017
    %1027 = vmatprep.subr.mxu0 0.0
    %1028 = vmatpush1.msra.mxu0 %v1016
    %1029 = vmatprep.subr.mxu0 0.0
    %1030 = vmatpush1.msra.mxu0 %v1015
    %1031 = vmatprep.subr.mxu0 0.0
    %1032 = vmatpush1.msra.mxu0 %v1014
    %1033 = vmatprep.subr.mxu0 0.0
    %1034 = vmatpush1.msra.mxu0 %v1013
    %1035 = vmatprep.subr.mxu0 0.0
    %1036 = vmatpush1.msra.mxu0 %v1012
    %1037 = vmatprep.subr.mxu0 0.0
    %1038 = vmatpush1.msra.mxu0 %v1011
    %1039 = vmatprep.subr.mxu0 0.0
    %1040 = vmatpush1.msra.mxu0 %v1010
    %1041 = vmatprep.subr.mxu0 0.0
    %1042 = vmatpush1.msra.mxu0 %v1009
    %1043 = vmatprep.subr.mxu0 0.0
    %1044 = vmatpush1.msra.mxu0 %v1008
    %1045 = vmatprep.subr.mxu0 0.0
    %1046 = vmatpush1.msra.mxu0 %v1007
    %1047 = vmatprep.subr.mxu0 0.0
    %1048 = vmatpush1.msra.mxu0 %v1006
    %1049 = vmatprep.subr.mxu0 0.0
    %1050 = vmatpush1.msra.mxu0 %v1005
    %1051 = vmatprep.subr.mxu0 0.0
    %1052 = vmatpush1.msra.mxu0 %v1004
    %1053 = vmatprep.subr.mxu0 0.0
    %1054 = vmatpush1.msra.mxu0 %v1003
    %1055 = vmatprep.subr.mxu0 0.0
    %1056 = vmatpush2.msra.mxu0 0.0
    %1057 = vmatprep.subr.mxu0 0.0
    %1058 = vmatpush2.msra.mxu0 0.0
    %1059 = vmatprep.subr.mxu0 0.0
    %1060 = vmatpush2.msra.mxu0 0.0
    %1061 = vmatprep.subr.mxu0 0.0
    %1062 = vmatpush2.msra.mxu0 0.0
    %1063 = vmatprep.subr.mxu0 0.0
    %1064 = vmatpush2.msra.mxu0 0.0
    %1065 = vmatprep.subr.mxu0 0.0
    %1066 = vmatpush2.msra.mxu0 0.0
    %1067 = vmatprep.subr.mxu0 0.0
    %1068 = vmatpush2.msra.mxu0 0.0
    %1069 = vmatprep.subr.mxu0 0.0
    %1070 = vmatpush2.msra.mxu0 0.0
    %1071 = vmatprep.subr.mxu0 0.0
    %1072 = vmatpush2.msra.mxu0 0.0
    %1073 = vmatprep.subr.mxu0 0.0
    %1074 = vmatpush2.msra.mxu0 0.0
    %1075 = vmatprep.subr.mxu0 0.0
    %1076 = vmatpush2.msra.mxu0 0.0
    %1077 = vmatprep.subr.mxu0 0.0
    %1078 = vmatpush2.msra.mxu0 0.0
    %1079 = vmatprep.subr.mxu0 0.0
    %1080 = vmatpush2.msra.mxu0 0.0
    %1081 = vmatprep.subr.mxu0 0.0
    %1082 = vmatpush2.msra.mxu0 0.0
    %1083 = vmatprep.subr.mxu0 0.0
    %1084 = vmatpush2.msra.mxu0 0.0
    %1085 = vmatprep.subr.mxu0 0.0
    %1086 = vmatpush2.msra.mxu0 0.0
    %1087 = vmatprep.mubr.f32.mxu0 0.0
    %1088 = vmatmul.mubr.f32.gmra.mxu0 %v1002
    %v1089 = vpop.f32.mrf.mxu0
    %v1090 = vadd.f32 %v1022, %v1089
    %v1091 = vpop.f32.mrf.mxu0
    %1092 = vdwg.mxu0
    %v1093 = vlaneseq
    %v1094 = vand.u32 %v1093, 127
    %vm1095 = vcmp.ge.s32.totalorder %v1094, 0
    %vm1096 = vcmp.lt.s32.totalorder %v1094, 9
    %vm1097 = vmand %vm1095, %vm1096
    %v1098 = vsel %vm1097, %v1090, -1e+30
    %1099 = vmax.xlane.f32.xlu0 %v1098
    %v1100 = vpop.xlane.xlu0 %1099
    %v1101 = vsub.f32 %v1090, %v1100
    %v1102 = vsel %vm1097, %v1101, -1e+30
    %v1103 = vmul.f32 %v1102, 1.442695
    %v1104 = vpow.pop %v1103
    %1105 = vadd.xlane.f32.xlu0 %v1104
    %v1106 = vpop.xlane.xlu0 %1105
    %v1107 = vrcp.pop %v1106
    %v1108 = vmul.f32 %v1104, %v1107
    %vm1109 = vcmp.ge.s32.totalorder %v1094, 9
    %vm1110 = vcmp.lt.s32.totalorder %v1094, 18
    %vm1111 = vmand %vm1109, %vm1110
    %v1112 = vsel %vm1111, %v1090, -1e+30
    %1113 = vmax.xlane.f32.xlu0 %v1112
    %v1114 = vpop.xlane.xlu0 %1113
    %v1115 = vsub.f32 %v1090, %v1114
    %v1116 = vsel %vm1111, %v1115, -1e+30
    %v1117 = vmul.f32 %v1116, 1.442695
    %v1118 = vpow.pop %v1117
    %1119 = vadd.xlane.f32.xlu0 %v1118
    %v1120 = vpop.xlane.xlu0 %1119
    %v1121 = vrcp.pop %v1120
    %v1122 = vmul.f32 %v1118, %v1121
    %v1123 = vadd.f32 %v1108, %v1122
    %v1124 = vmax.f32 %v1090, 0.0
    %v1125 = vlaneseq
    %v1126 = vshrl.u32 %v1125, 7
    %v1127 = vsub.s32 5, %v1126
    %v1128 = vrot.slane %v28, %v1127
    %v1129 = vmul.f32 %v1124, %v1128
    %1130 = vadd.xlane.f32.xlu0 %v1129
    %v1131 = vpop.xlane.xlu0 %1130
    %v1132 = vtanh.pop %v1131
    %vm1133 = vcmp.eq.s32.totalorder %v1094, 18
    %v1134 = vsel %vm1133, %v1132, %v1123
    %1135 = vst [vmem:[%s3] sm:$0xff] %v1134
    // Predicated region
    $region18: #{neural_network_forward.1} parent=1 // pred_check
      _
    $region19: #{neural_network_forward.1} parent=1 // pred_check_branch
      %1137 = sbr.rel (0) target = $region21
    $region20: #{neural_network_forward.1} parent=1 // pred_region
      _
    $region21: #{neural_network_forward.1} parent=1 // pred_fallthru
      _
    // Predicated region
    $region22: #{neural_network_forward.1} parent=1 // pred_check
      _
    $region23: #{neural_network_forward.1} parent=1 // pred_check_branch
      %1139 = sbr.rel (0) target = $region25
    $region24: #{neural_network_forward.1} parent=1 // pred_region
      _
    $region25: #{neural_network_forward.1} parent=1 // pred_fallthru
      _
    %1140 = vsyncpa [#allocation3], 1

</llo_original>
